<compile_context>
chip_gen: v5e
topology: v5e:2x2
jax: 0.10.0
libtpu: 0.0.40
codegen_flags: <defaults>
</compile_context>

<pallas_src>
import jax
import jax.numpy as jnp
from jax.experimental import pallas as pl
from jax.experimental.pallas import tpu as pltpu

# ---------------- model hyper-params (small, consistent with the module) ----
B       = 2      # batch
LQ      = 8      # decoder (query) length
LK      = 8      # encoder (key/value) length  (== LQ for the packed act slab)
D_MODEL = 32
D_INNER = 64
N_HEAD  = 4
D_K     = 8
D_V     = 8
EPS     = 1e-6

LANES   = 128
P_ROWS  = 144    # parameter-slab rows: 32 + 8 + 8 + 32 + 64
A_ROWS  = B * LQ # activation-slab rows (= B*LK)


def _layer_norm(x, gamma, beta):
    """PyTorch nn.LayerNorm over the last axis (biased variance)."""
    mu = jnp.mean(x, axis=-1, keepdims=True)
    var = jnp.mean((x - mu) ** 2, axis=-1, keepdims=True)
    return (x - mu) * jax.lax.rsqrt(var + EPS) * gamma + beta


def _decoder_layer_kernel(act_ref, p_ref, out_ref):
    f32 = jnp.float32
    inv_temp = f32(1.0 / (D_K ** 0.5))

    # ---- unpack activation slab (one load, static lane slices) -------------
    act = act_ref[...]                                   # (B*LQ, 128)
    dec_all  = act[:, 0:D_MODEL]                         # (16, 32)
    enc_all  = act[:, D_MODEL:2 * D_MODEL]               # (16, 32)
    mask_all = act[:, 2 * D_MODEL:2 * D_MODEL + LK]      # (16, 8) exact 0/1

    # ---- unpack parameter slab (static sublane/lane slices) ----------------
    W    = p_ref[0:D_MODEL, :]                           # (32, 128) [wq|wk|wv|wo]
    misc = p_ref[32:48, :]                               # (16, 128)
    ln   = misc[0:8, 0:D_MODEL]                          # (8, 32): 8 LN vectors
    b1   = misc[8:9, 0:D_INNER]                          # (1, 64)
    b2   = misc[9:10, 0:D_MODEL]                         # (1, 32)
    w1   = p_ref[48:80, :][:, 0:D_INNER]                 # (32, 64)
    w2   = p_ref[80:144, :][:, 0:D_MODEL]                # (64, 32)

    # ---- batch-stacked Q/K/V projections: 2 MXU pushes total ---------------
    # dec_proj lanes 0:32 = Q ; enc_proj lanes 32:64 = K, 64:96 = V
    dec_proj = jnp.dot(dec_all, W, preferred_element_type=f32)   # (16, 128)
    enc_proj = jnp.dot(enc_all, W, preferred_element_type=f32)   # (16, 128)

    ctx_rows = []
    attn_rows = []
    for b in range(B):                                   # B=2, unrolled
        r0 = b * LQ
        mb = mask_all[r0:r0 + LQ, :] == 0.0              # compare hoisted out of head loop
        head_attn = []
        head_ctx = []
        for h in range(N_HEAD):                          # tiny (8,8) matmuls
            c = h * D_K
            q = dec_proj[r0:r0 + LQ, c:c + D_K]                              # (8, 8)
            k = enc_proj[r0:r0 + LK, D_MODEL + c:D_MODEL + c + D_K]          # (8, 8)
            v = enc_proj[r0:r0 + LK, 2 * D_MODEL + c:2 * D_MODEL + c + D_V]  # (8, 8)

            s = jax.lax.dot_general(q, k, (((1,), (1,)), ((), ())),
                                    preferred_element_type=f32) * inv_temp
            s = jnp.where(mb, f32(-1e9), s)
            s = s - jnp.max(s, axis=-1, keepdims=True)
            e = jnp.exp(s)
            attn = e / jnp.sum(e, axis=-1, keepdims=True)   # exact divide
            head_attn.append(attn)
            head_ctx.append(jnp.dot(attn, v, preferred_element_type=f32))
        attn_rows.append(jnp.concatenate(head_attn, axis=-1))   # (LQ, N_HEAD*LK)
        ctx_rows.append(jnp.concatenate(head_ctx, axis=-1))     # (LQ, N_HEAD*D_V)

    ctx_all  = jnp.concatenate(ctx_rows, axis=0)         # (16, 32)
    attn_all = jnp.concatenate(attn_rows, axis=0)        # (16, 32)

    # ---- output projection (single matmul; N_HEAD*D_V == D_MODEL) ----------
    wo = W[:, 3 * D_MODEL:4 * D_MODEL]                   # (32, 32)
    proj = jnp.dot(ctx_all, wo, preferred_element_type=f32)     # (16, 32)

    # ---- MHA residual + internal LN, then DecoderLayer.layer_norm_3 --------
    x = proj + dec_all
    x = _layer_norm(x, ln[0:1, :], ln[1:2, :])
    x = _layer_norm(x, ln[2:3, :], ln[3:4, :])

    # ---- FFN: w2(relu(w1 x)) + residual, internal LN, then layer_norm_4 ----
    residual = x
    h1 = jnp.maximum(jnp.dot(x, w1, preferred_element_type=f32) + b1, 0.0)
    x = jnp.dot(h1, w2, preferred_element_type=f32) + b2 + residual
    x = _layer_norm(x, ln[4:5, :], ln[5:6, :])
    x = _layer_norm(x, ln[6:7, :], ln[7:8, :])

    # ---- single lane-dense 128-wide output store ----------------------------
    out_ref[...] = jnp.concatenate(
        [x, attn_all, jnp.zeros((A_ROWS, LANES - 2 * D_MODEL), f32)], axis=-1)


def _pad_lanes(a, width=LANES):
    return jnp.pad(a, ((0, 0), (0, width - a.shape[1])))


def decoder_layer_g(dec_input, enc_output, enc_mask, params):
    """dec_input: (B,LQ,D), enc_output: (B,LK,D), enc_mask: (B,LQ,LK)."""
    (wq, wk, wv, wo,
     ln_mha_g, ln_mha_b, ln3_g, ln3_b,
     w1, b1, w2, b2,
     ln_ffn_g, ln_ffn_b, ln4_g, ln4_b) = params

    # ---- pack ALL parameters into one (P_ROWS, 128) slab (one DMA) ----------
    rows_w = jnp.concatenate([wq, wk, wv, wo], axis=1)                  # (32, 128)
    ln_pack = jnp.concatenate([ln_mha_g, ln_mha_b, ln3_g, ln3_b,
                               ln_ffn_g, ln_ffn_b, ln4_g, ln4_b], 0)    # (8, 32)
    rows_ln = _pad_lanes(ln_pack)                                       # rows 32-39
    rows_b = jnp.concatenate([_pad_lanes(b1), _pad_lanes(b2),
                              jnp.zeros((6, LANES), jnp.float32)], 0)   # rows 40-47
    rows_w1 = _pad_lanes(w1)                                            # rows 48-79
    rows_w2 = _pad_lanes(w2)                                            # rows 80-143
    p_slab = jnp.concatenate([rows_w, rows_ln, rows_b, rows_w1, rows_w2], 0)

    # ---- pack ALL activations into one (B*LQ, 128) slab (one DMA) -----------
    dec2 = dec_input.reshape(B * LQ, D_MODEL)
    enc2 = enc_output.reshape(B * LK, D_MODEL)
    mask2 = enc_mask.reshape(B * LQ, LK)
    act_slab = jnp.concatenate(
        [dec2, enc2, mask2,
         jnp.zeros((A_ROWS, LANES - 2 * D_MODEL - LK), jnp.float32)], axis=-1)

    grid_spec = pltpu.PrefetchScalarGridSpec(
        num_scalar_prefetch=0,
        grid=(1,),                                      # single step, whole blocks
        in_specs=[pl.BlockSpec((A_ROWS, LANES), lambda i: (0, 0)),
                  pl.BlockSpec((P_ROWS, LANES), lambda i: (0, 0))],
        out_specs=pl.BlockSpec((A_ROWS, LANES), lambda i: (0, 0)),
    )

    out = pl.pallas_call(
        _decoder_layer_kernel,
        out_shape=jax.ShapeDtypeStruct((A_ROWS, LANES), jnp.float32),
        grid_spec=grid_spec,
        compiler_params=pltpu.CompilerParams(
            dimension_semantics=("arbitrary",)),
    )(act_slab, p_slab)

    # ---- unpack lane-dense output slab --------------------------------------
    x = out[:, 0:D_MODEL].reshape(B, LQ, D_MODEL)
    attn = out[:, D_MODEL:2 * D_MODEL].reshape(B, LQ, N_HEAD, LK).transpose(0, 2, 1, 3)
    return x, attn


# ---------------------------- pure-JAX reference ----------------------------
def decoder_layer_g_ref(dec_input, enc_output, enc_mask, params):
    (wq, wk, wv, wo,
     ln_mha_g, ln_mha_b, ln3_g, ln3_b,
     w1, b1, w2, b2,
     ln_ffn_g, ln_ffn_b, ln4_g, ln4_b) = params

    def ln(x, g, b):
        mu = jnp.mean(x, -1, keepdims=True)
        var = jnp.mean((x - mu) ** 2, -1, keepdims=True)
        return (x - mu) / jnp.sqrt(var + EPS) * g[0] + b[0]

    q = (dec_input @ wq).reshape(B, LQ, N_HEAD, D_K).transpose(0, 2, 1, 3)
    k = (enc_output @ wk).reshape(B, LK, N_HEAD, D_K).transpose(0, 2, 1, 3)
    v = (enc_output @ wv).reshape(B, LK, N_HEAD, D_V).transpose(0, 2, 1, 3)
    scores = jnp.einsum("bhqd,bhkd->bhqk", q, k) / (D_K ** 0.5)
    scores = jnp.where(enc_mask[:, None] == 0, -1e9, scores)
    attn = jax.nn.softmax(scores, axis=-1)
    ctx = jnp.einsum("bhqk,bhkd->bhqd", attn, v)
    ctx = ctx.transpose(0, 2, 1, 3).reshape(B, LQ, N_HEAD * D_V)
    x = ctx @ wo + dec_input
    x = ln(x, ln_mha_g, ln_mha_b)
    x = ln(x, ln3_g, ln3_b)
    residual = x
    x = jnp.maximum(x @ w1 + b1[0], 0.0) @ w2 + b2[0] + residual
    x = ln(x, ln_ffn_g, ln_ffn_b)
    x = ln(x, ln4_g, ln4_b)
    return x, attn


# --------------------------------- main --------------------------------------
if __name__ == "__main__":
    key = jax.random.PRNGKey(0)
    keys = jax.random.split(key, 16)

    def nrm(k, shape, scale=0.05):
        return (scale * jax.random.normal(k, shape)).astype(jnp.float32)

    # parameters (deterministic synthetic init)
    wq = nrm(keys[0], (D_MODEL, N_HEAD * D_K))
    wk = nrm(keys[1], (D_MODEL, N_HEAD * D_K))
    wv = nrm(keys[2], (D_MODEL, N_HEAD * D_V))
    wo = nrm(keys[3], (N_HEAD * D_V, D_MODEL))
    ln_mha_g = (1.0 + nrm(keys[4], (1, D_MODEL)))
    ln_mha_b = nrm(keys[5], (1, D_MODEL))
    ln3_g = (1.0 + nrm(keys[6], (1, D_MODEL)))
    ln3_b = nrm(keys[7], (1, D_MODEL))
    w1 = nrm(keys[8], (D_MODEL, D_INNER))
    b1 = nrm(keys[9], (1, D_INNER))
    w2 = nrm(keys[10], (D_INNER, D_MODEL))
    b2 = nrm(keys[11], (1, D_MODEL))
    ln_ffn_g = (1.0 + nrm(keys[12], (1, D_MODEL)))
    ln_ffn_b = nrm(keys[13], (1, D_MODEL))
    ln4_g = (1.0 + nrm(keys[14], (1, D_MODEL)))
    ln4_b = nrm(keys[15], (1, D_MODEL))
    params = (wq, wk, wv, wo,
              ln_mha_g, ln_mha_b, ln3_g, ln3_b,
              w1, b1, w2, b2,
              ln_ffn_g, ln_ffn_b, ln4_g, ln4_b)

    # inputs
    ikey = jax.random.split(jax.random.PRNGKey(42), 2)
    dec_input = jax.random.normal(ikey[0], (B, LQ, D_MODEL), jnp.float32)
    enc_output = jax.random.normal(ikey[1], (B, LK, D_MODEL), jnp.float32)
    enc_mask = jnp.ones((B, LQ, LK), jnp.float32)
    enc_mask = enc_mask.at[1, :, LK - 2:].set(0.0)  # pad last 2 enc positions of batch 1

    x_out, attn_out = decoder_layer_g(dec_input, enc_output, enc_mask, params)
    jax.block_until_ready((x_out, attn_out))

    x_ref, attn_ref = decoder_layer_g_ref(dec_input, enc_output, enc_mask, params)
    assert jnp.allclose(x_out, x_ref, atol=1e-4, rtol=1e-4), "x mismatch"
    assert jnp.allclose(attn_out, attn_ref, atol=1e-4, rtol=1e-4), "attn mismatch"

    print("KERNEL_OK")
</pallas_src>

<mosaic_0001>
module attributes {stable_mosaic.version = 11 : i64} {
  func.func @_decoder_layer_kernel(%arg0: i32, %arg1: memref<16x128xf32, #tpu.memory_space<vmem>>, %arg2: memref<144x128xf32, #tpu.memory_space<vmem>>, %arg3: memref<16x128xf32, #tpu.memory_space<vmem>>) attributes {dimension_semantics = [#tpu.dimension_semantics<arbitrary>], iteration_bounds = array<i64: 1>, scalar_prefetch = 0 : i64, scratch_operands = 0 : i64, tpu.core_type = #tpu.core_type<tc>, window_params = [{pipeline_mode = #tpu.pipeline_mode<synchronous>, transform_indices = @transform_0, window_bounds = array<i64: 16, 128>}, {pipeline_mode = #tpu.pipeline_mode<synchronous>, transform_indices = @transform_1, window_bounds = array<i64: 144, 128>}, {pipeline_mode = #tpu.pipeline_mode<synchronous>, transform_indices = @transform_2, window_bounds = array<i64: 16, 128>}]} {
    %c0 = arith.constant 0 : index
    %c0_0 = arith.constant 0 : index
    %0 = vector.load %arg1[%c0, %c0_0] : memref<16x128xf32, #tpu.memory_space<vmem>>, vector<16x128xf32>
    %1 = vector.extract_strided_slice %0 {offsets = [0, 0], sizes = [16, 32], strides = [1, 1]} : vector<16x128xf32> to vector<16x32xf32>
    %2 = vector.extract_strided_slice %0 {offsets = [0, 32], sizes = [16, 32], strides = [1, 1]} : vector<16x128xf32> to vector<16x32xf32>
    %3 = vector.extract_strided_slice %0 {offsets = [0, 64], sizes = [16, 8], strides = [1, 1]} : vector<16x128xf32> to vector<16x8xf32>
    %c0_1 = arith.constant 0 : index
    %c0_2 = arith.constant 0 : index
    %4 = vector.load %arg2[%c0_1, %c0_2] : memref<144x128xf32, #tpu.memory_space<vmem>>, vector<32x128xf32>
    %c32 = arith.constant 32 : index
    %c0_3 = arith.constant 0 : index
    %5 = vector.load %arg2[%c32, %c0_3] : memref<144x128xf32, #tpu.memory_space<vmem>>, vector<16x128xf32>
    %6 = vector.extract_strided_slice %5 {offsets = [0, 0], sizes = [8, 32], strides = [1, 1]} : vector<16x128xf32> to vector<8x32xf32>
    %7 = vector.extract_strided_slice %5 {offsets = [8, 0], sizes = [1, 64], strides = [1, 1]} : vector<16x128xf32> to vector<1x64xf32>
    %8 = vector.extract_strided_slice %5 {offsets = [9, 0], sizes = [1, 32], strides = [1, 1]} : vector<16x128xf32> to vector<1x32xf32>
    %c48 = arith.constant 48 : index
    %c0_4 = arith.constant 0 : index
    %9 = vector.load %arg2[%c48, %c0_4] : memref<144x128xf32, #tpu.memory_space<vmem>>, vector<32x128xf32>
    %10 = vector.extract_strided_slice %9 {offsets = [0, 0], sizes = [32, 64], strides = [1, 1]} : vector<32x128xf32> to vector<32x64xf32>
    %c80 = arith.constant 80 : index
    %c0_5 = arith.constant 0 : index
    %11 = vector.load %arg2[%c80, %c0_5] : memref<144x128xf32, #tpu.memory_space<vmem>>, vector<64x128xf32>
    %12 = vector.extract_strided_slice %11 {offsets = [0, 0], sizes = [64, 32], strides = [1, 1]} : vector<64x128xf32> to vector<64x32xf32>
    %cst = arith.constant dense<0.000000e+00> : vector<16x128xf32>
    %13 = tpu.matmul %1, %4, %cst {dimension_numbers = #tpu.dot_dimension_numbers<[1], [0], [0], [1], [0, 0, 1, 1], [], []>} : vector<16x32xf32>, vector<32x128xf32>, vector<16x128xf32> -> vector<16x128xf32>
    %cst_6 = arith.constant dense<0.000000e+00> : vector<16x128xf32>
    %14 = tpu.matmul %2, %4, %cst_6 {dimension_numbers = #tpu.dot_dimension_numbers<[1], [0], [0], [1], [0, 0, 1, 1], [], []>} : vector<16x32xf32>, vector<32x128xf32>, vector<16x128xf32> -> vector<16x128xf32>
    %15 = vector.extract_strided_slice %3 {offsets = [0, 0], sizes = [8, 8], strides = [1, 1]} : vector<16x8xf32> to vector<8x8xf32>
    %cst_7 = arith.constant 0.000000e+00 : f32
    %16 = vector.broadcast %cst_7 : f32 to vector<8x8xf32>
    %17 = arith.cmpf oeq, %15, %16 : vector<8x8xf32>
    %18 = vector.extract_strided_slice %13 {offsets = [0, 0], sizes = [8, 8], strides = [1, 1]} : vector<16x128xf32> to vector<8x8xf32>
    %19 = vector.extract_strided_slice %14 {offsets = [0, 32], sizes = [8, 8], strides = [1, 1]} : vector<16x128xf32> to vector<8x8xf32>
    %20 = vector.extract_strided_slice %14 {offsets = [0, 64], sizes = [8, 8], strides = [1, 1]} : vector<16x128xf32> to vector<8x8xf32>
    %cst_8 = arith.constant dense<0.000000e+00> : vector<8x8xf32>
    %21 = tpu.matmul %18, %19, %cst_8 {dimension_numbers = #tpu.dot_dimension_numbers<[1], [1], [0], [0], [0, 0, 1, 0], [], []>} : vector<8x8xf32>, vector<8x8xf32>, vector<8x8xf32> -> vector<8x8xf32>
    %cst_9 = arith.constant 0.353553385 : f32
    %22 = vector.broadcast %cst_9 : f32 to vector<8x8xf32>
    %23 = arith.mulf %21, %22 : vector<8x8xf32>
    %cst_10 = arith.constant -1.000000e+09 : f32
    %24 = vector.broadcast %cst_10 : f32 to vector<8x8xf32>
    %25 = arith.select %17, %24, %23 : vector<8x8xi1>, vector<8x8xf32>
    %cst_11 = arith.constant dense<0xFF800000> : vector<8xf32>
    %26 = vector.multi_reduction <maximumf>, %25, %cst_11 [1] : vector<8x8xf32> to vector<8xf32>
    %27 = vector.shape_cast %26 : vector<8xf32> to vector<8x1xf32>
    %28 = vector.broadcast %27 : vector<8x1xf32> to vector<8x8xf32>
    %29 = arith.subf %25, %28 : vector<8x8xf32>
    %30 = math.exp %29 : vector<8x8xf32>
    %cst_12 = arith.constant dense<0.000000e+00> : vector<8xf32>
    %31 = vector.multi_reduction <add>, %30, %cst_12 [1] : vector<8x8xf32> to vector<8xf32>
    %32 = vector.shape_cast %31 : vector<8xf32> to vector<8x1xf32>
    %33 = vector.broadcast %32 : vector<8x1xf32> to vector<8x8xf32>
    %34 = arith.divf %30, %33 : vector<8x8xf32>
    %cst_13 = arith.constant dense<0.000000e+00> : vector<8x8xf32>
    %35 = tpu.matmul %34, %20, %cst_13 {dimension_numbers = #tpu.dot_dimension_numbers<[1], [0], [0], [1], [0, 0, 1, 1], [], []>} : vector<8x8xf32>, vector<8x8xf32>, vector<8x8xf32> -> vector<8x8xf32>
    %36 = vector.extract_strided_slice %13 {offsets = [0, 8], sizes = [8, 8], strides = [1, 1]} : vector<16x128xf32> to vector<8x8xf32>
    %37 = vector.extract_strided_slice %14 {offsets = [0, 40], sizes = [8, 8], strides = [1, 1]} : vector<16x128xf32> to vector<8x8xf32>
    %38 = vector.extract_strided_slice %14 {offsets = [0, 72], sizes = [8, 8], strides = [1, 1]} : vector<16x128xf32> to vector<8x8xf32>
    %cst_14 = arith.constant dense<0.000000e+00> : vector<8x8xf32>
    %39 = tpu.matmul %36, %37, %cst_14 {dimension_numbers = #tpu.dot_dimension_numbers<[1], [1], [0], [0], [0, 0, 1, 0], [], []>} : vector<8x8xf32>, vector<8x8xf32>, vector<8x8xf32> -> vector<8x8xf32>
    %cst_15 = arith.constant 0.353553385 : f32
    %40 = vector.broadcast %cst_15 : f32 to vector<8x8xf32>
    %41 = arith.mulf %39, %40 : vector<8x8xf32>
    %cst_16 = arith.constant -1.000000e+09 : f32
    %42 = vector.broadcast %cst_16 : f32 to vector<8x8xf32>
    %43 = arith.select %17, %42, %41 : vector<8x8xi1>, vector<8x8xf32>
    %cst_17 = arith.constant dense<0xFF800000> : vector<8xf32>
    %44 = vector.multi_reduction <maximumf>, %43, %cst_17 [1] : vector<8x8xf32> to vector<8xf32>
    %45 = vector.shape_cast %44 : vector<8xf32> to vector<8x1xf32>
    %46 = vector.broadcast %45 : vector<8x1xf32> to vector<8x8xf32>
    %47 = arith.subf %43, %46 : vector<8x8xf32>
    %48 = math.exp %47 : vector<8x8xf32>
    %cst_18 = arith.constant dense<0.000000e+00> : vector<8xf32>
    %49 = vector.multi_reduction <add>, %48, %cst_18 [1] : vector<8x8xf32> to vector<8xf32>
    %50 = vector.shape_cast %49 : vector<8xf32> to vector<8x1xf32>
    %51 = vector.broadcast %50 : vector<8x1xf32> to vector<8x8xf32>
    %52 = arith.divf %48, %51 : vector<8x8xf32>
    %cst_19 = arith.constant dense<0.000000e+00> : vector<8x8xf32>
    %53 = tpu.matmul %52, %38, %cst_19 {dimension_numbers = #tpu.dot_dimension_numbers<[1], [0], [0], [1], [0, 0, 1, 1], [], []>} : vector<8x8xf32>, vector<8x8xf32>, vector<8x8xf32> -> vector<8x8xf32>
    %54 = vector.extract_strided_slice %13 {offsets = [0, 16], sizes = [8, 8], strides = [1, 1]} : vector<16x128xf32> to vector<8x8xf32>
    %55 = vector.extract_strided_slice %14 {offsets = [0, 48], sizes = [8, 8], strides = [1, 1]} : vector<16x128xf32> to vector<8x8xf32>
    %56 = vector.extract_strided_slice %14 {offsets = [0, 80], sizes = [8, 8], strides = [1, 1]} : vector<16x128xf32> to vector<8x8xf32>
    %cst_20 = arith.constant dense<0.000000e+00> : vector<8x8xf32>
    %57 = tpu.matmul %54, %55, %cst_20 {dimension_numbers = #tpu.dot_dimension_numbers<[1], [1], [0], [0], [0, 0, 1, 0], [], []>} : vector<8x8xf32>, vector<8x8xf32>, vector<8x8xf32> -> vector<8x8xf32>
    %cst_21 = arith.constant 0.353553385 : f32
    %58 = vector.broadcast %cst_21 : f32 to vector<8x8xf32>
    %59 = arith.mulf %57, %58 : vector<8x8xf32>
    %cst_22 = arith.constant -1.000000e+09 : f32
    %60 = vector.broadcast %cst_22 : f32 to vector<8x8xf32>
    %61 = arith.select %17, %60, %59 : vector<8x8xi1>, vector<8x8xf32>
    %cst_23 = arith.constant dense<0xFF800000> : vector<8xf32>
    %62 = vector.multi_reduction <maximumf>, %61, %cst_23 [1] : vector<8x8xf32> to vector<8xf32>
    %63 = vector.shape_cast %62 : vector<8xf32> to vector<8x1xf32>
    %64 = vector.broadcast %63 : vector<8x1xf32> to vector<8x8xf32>
    %65 = arith.subf %61, %64 : vector<8x8xf32>
    %66 = math.exp %65 : vector<8x8xf32>
    %cst_24 = arith.constant dense<0.000000e+00> : vector<8xf32>
    %67 = vector.multi_reduction <add>, %66, %cst_24 [1] : vector<8x8xf32> to vector<8xf32>
    %68 = vector.shape_cast %67 : vector<8xf32> to vector<8x1xf32>
    %69 = vector.broadcast %68 : vector<8x1xf32> to vector<8x8xf32>
    %70 = arith.divf %66, %69 : vector<8x8xf32>
    %cst_25 = arith.constant dense<0.000000e+00> : vector<8x8xf32>
    %71 = tpu.matmul %70, %56, %cst_25 {dimension_numbers = #tpu.dot_dimension_numbers<[1], [0], [0], [1], [0, 0, 1, 1], [], []>} : vector<8x8xf32>, vector<8x8xf32>, vector<8x8xf32> -> vector<8x8xf32>
    %72 = vector.extract_strided_slice %13 {offsets = [0, 24], sizes = [8, 8], strides = [1, 1]} : vector<16x128xf32> to vector<8x8xf32>
    %73 = vector.extract_strided_slice %14 {offsets = [0, 56], sizes = [8, 8], strides = [1, 1]} : vector<16x128xf32> to vector<8x8xf32>
    %74 = vector.extract_strided_slice %14 {offsets = [0, 88], sizes = [8, 8], strides = [1, 1]} : vector<16x128xf32> to vector<8x8xf32>
    %cst_26 = arith.constant dense<0.000000e+00> : vector<8x8xf32>
    %75 = tpu.matmul %72, %73, %cst_26 {dimension_numbers = #tpu.dot_dimension_numbers<[1], [1], [0], [0], [0, 0, 1, 0], [], []>} : vector<8x8xf32>, vector<8x8xf32>, vector<8x8xf32> -> vector<8x8xf32>
    %cst_27 = arith.constant 0.353553385 : f32
    %76 = vector.broadcast %cst_27 : f32 to vector<8x8xf32>
    %77 = arith.mulf %75, %76 : vector<8x8xf32>
    %cst_28 = arith.constant -1.000000e+09 : f32
    %78 = vector.broadcast %cst_28 : f32 to vector<8x8xf32>
    %79 = arith.select %17, %78, %77 : vector<8x8xi1>, vector<8x8xf32>
    %cst_29 = arith.constant dense<0xFF800000> : vector<8xf32>
    %80 = vector.multi_reduction <maximumf>, %79, %cst_29 [1] : vector<8x8xf32> to vector<8xf32>
    %81 = vector.shape_cast %80 : vector<8xf32> to vector<8x1xf32>
    %82 = vector.broadcast %81 : vector<8x1xf32> to vector<8x8xf32>
    %83 = arith.subf %79, %82 : vector<8x8xf32>
    %84 = math.exp %83 : vector<8x8xf32>
    %cst_30 = arith.constant dense<0.000000e+00> : vector<8xf32>
    %85 = vector.multi_reduction <add>, %84, %cst_30 [1] : vector<8x8xf32> to vector<8xf32>
    %86 = vector.shape_cast %85 : vector<8xf32> to vector<8x1xf32>
    %87 = vector.broadcast %86 : vector<8x1xf32> to vector<8x8xf32>
    %88 = arith.divf %84, %87 : vector<8x8xf32>
    %cst_31 = arith.constant dense<0.000000e+00> : vector<8x8xf32>
    %89 = tpu.matmul %88, %74, %cst_31 {dimension_numbers = #tpu.dot_dimension_numbers<[1], [0], [0], [1], [0, 0, 1, 1], [], []>} : vector<8x8xf32>, vector<8x8xf32>, vector<8x8xf32> -> vector<8x8xf32>
    %90 = tpu.concatenate %34, %52, %70, %88 in 1 : vector<8x8xf32>, vector<8x8xf32>, vector<8x8xf32>, vector<8x8xf32> -> vector<8x32xf32>
    %91 = tpu.concatenate %35, %53, %71, %89 in 1 : vector<8x8xf32>, vector<8x8xf32>, vector<8x8xf32>, vector<8x8xf32> -> vector<8x32xf32>
    %92 = vector.extract_strided_slice %3 {offsets = [8, 0], sizes = [8, 8], strides = [1, 1]} : vector<16x8xf32> to vector<8x8xf32>
    %cst_32 = arith.constant 0.000000e+00 : f32
    %93 = vector.broadcast %cst_32 : f32 to vector<8x8xf32>
    %94 = arith.cmpf oeq, %92, %93 : vector<8x8xf32>
    %95 = vector.extract_strided_slice %13 {offsets = [8, 0], sizes = [8, 8], strides = [1, 1]} : vector<16x128xf32> to vector<8x8xf32>
    %96 = vector.extract_strided_slice %14 {offsets = [8, 32], sizes = [8, 8], strides = [1, 1]} : vector<16x128xf32> to vector<8x8xf32>
    %97 = vector.extract_strided_slice %14 {offsets = [8, 64], sizes = [8, 8], strides = [1, 1]} : vector<16x128xf32> to vector<8x8xf32>
    %cst_33 = arith.constant dense<0.000000e+00> : vector<8x8xf32>
    %98 = tpu.matmul %95, %96, %cst_33 {dimension_numbers = #tpu.dot_dimension_numbers<[1], [1], [0], [0], [0, 0, 1, 0], [], []>} : vector<8x8xf32>, vector<8x8xf32>, vector<8x8xf32> -> vector<8x8xf32>
    %cst_34 = arith.constant 0.353553385 : f32
    %99 = vector.broadcast %cst_34 : f32 to vector<8x8xf32>
    %100 = arith.mulf %98, %99 : vector<8x8xf32>
    %cst_35 = arith.constant -1.000000e+09 : f32
    %101 = vector.broadcast %cst_35 : f32 to vector<8x8xf32>
    %102 = arith.select %94, %101, %100 : vector<8x8xi1>, vector<8x8xf32>
    %cst_36 = arith.constant dense<0xFF800000> : vector<8xf32>
    %103 = vector.multi_reduction <maximumf>, %102, %cst_36 [1] : vector<8x8xf32> to vector<8xf32>
    %104 = vector.shape_cast %103 : vector<8xf32> to vector<8x1xf32>
    %105 = vector.broadcast %104 : vector<8x1xf32> to vector<8x8xf32>
    %106 = arith.subf %102, %105 : vector<8x8xf32>
    %107 = math.exp %106 : vector<8x8xf32>
    %cst_37 = arith.constant dense<0.000000e+00> : vector<8xf32>
    %108 = vector.multi_reduction <add>, %107, %cst_37 [1] : vector<8x8xf32> to vector<8xf32>
    %109 = vector.shape_cast %108 : vector<8xf32> to vector<8x1xf32>
    %110 = vector.broadcast %109 : vector<8x1xf32> to vector<8x8xf32>
    %111 = arith.divf %107, %110 : vector<8x8xf32>
    %cst_38 = arith.constant dense<0.000000e+00> : vector<8x8xf32>
    %112 = tpu.matmul %111, %97, %cst_38 {dimension_numbers = #tpu.dot_dimension_numbers<[1], [0], [0], [1], [0, 0, 1, 1], [], []>} : vector<8x8xf32>, vector<8x8xf32>, vector<8x8xf32> -> vector<8x8xf32>
    %113 = vector.extract_strided_slice %13 {offsets = [8, 8], sizes = [8, 8], strides = [1, 1]} : vector<16x128xf32> to vector<8x8xf32>
    %114 = vector.extract_strided_slice %14 {offsets = [8, 40], sizes = [8, 8], strides = [1, 1]} : vector<16x128xf32> to vector<8x8xf32>
    %115 = vector.extract_strided_slice %14 {offsets = [8, 72], sizes = [8, 8], strides = [1, 1]} : vector<16x128xf32> to vector<8x8xf32>
    %cst_39 = arith.constant dense<0.000000e+00> : vector<8x8xf32>
    %116 = tpu.matmul %113, %114, %cst_39 {dimension_numbers = #tpu.dot_dimension_numbers<[1], [1], [0], [0], [0, 0, 1, 0], [], []>} : vector<8x8xf32>, vector<8x8xf32>, vector<8x8xf32> -> vector<8x8xf32>
    %cst_40 = arith.constant 0.353553385 : f32
    %117 = vector.broadcast %cst_40 : f32 to vector<8x8xf32>
    %118 = arith.mulf %116, %117 : vector<8x8xf32>
    %cst_41 = arith.constant -1.000000e+09 : f32
    %119 = vector.broadcast %cst_41 : f32 to vector<8x8xf32>
    %120 = arith.select %94, %119, %118 : vector<8x8xi1>, vector<8x8xf32>
    %cst_42 = arith.constant dense<0xFF800000> : vector<8xf32>
    %121 = vector.multi_reduction <maximumf>, %120, %cst_42 [1] : vector<8x8xf32> to vector<8xf32>
    %122 = vector.shape_cast %121 : vector<8xf32> to vector<8x1xf32>
    %123 = vector.broadcast %122 : vector<8x1xf32> to vector<8x8xf32>
    %124 = arith.subf %120, %123 : vector<8x8xf32>
    %125 = math.exp %124 : vector<8x8xf32>
    %cst_43 = arith.constant dense<0.000000e+00> : vector<8xf32>
    %126 = vector.multi_reduction <add>, %125, %cst_43 [1] : vector<8x8xf32> to vector<8xf32>
    %127 = vector.shape_cast %126 : vector<8xf32> to vector<8x1xf32>
    %128 = vector.broadcast %127 : vector<8x1xf32> to vector<8x8xf32>
    %129 = arith.divf %125, %128 : vector<8x8xf32>
    %cst_44 = arith.constant dense<0.000000e+00> : vector<8x8xf32>
    %130 = tpu.matmul %129, %115, %cst_44 {dimension_numbers = #tpu.dot_dimension_numbers<[1], [0], [0], [1], [0, 0, 1, 1], [], []>} : vector<8x8xf32>, vector<8x8xf32>, vector<8x8xf32> -> vector<8x8xf32>
    %131 = vector.extract_strided_slice %13 {offsets = [8, 16], sizes = [8, 8], strides = [1, 1]} : vector<16x128xf32> to vector<8x8xf32>
    %132 = vector.extract_strided_slice %14 {offsets = [8, 48], sizes = [8, 8], strides = [1, 1]} : vector<16x128xf32> to vector<8x8xf32>
    %133 = vector.extract_strided_slice %14 {offsets = [8, 80], sizes = [8, 8], strides = [1, 1]} : vector<16x128xf32> to vector<8x8xf32>
    %cst_45 = arith.constant dense<0.000000e+00> : vector<8x8xf32>
    %134 = tpu.matmul %131, %132, %cst_45 {dimension_numbers = #tpu.dot_dimension_numbers<[1], [1], [0], [0], [0, 0, 1, 0], [], []>} : vector<8x8xf32>, vector<8x8xf32>, vector<8x8xf32> -> vector<8x8xf32>
    %cst_46 = arith.constant 0.353553385 : f32
    %135 = vector.broadcast %cst_46 : f32 to vector<8x8xf32>
    %136 = arith.mulf %134, %135 : vector<8x8xf32>
    %cst_47 = arith.constant -1.000000e+09 : f32
    %137 = vector.broadcast %cst_47 : f32 to vector<8x8xf32>
    %138 = arith.select %94, %137, %136 : vector<8x8xi1>, vector<8x8xf32>
    %cst_48 = arith.constant dense<0xFF800000> : vector<8xf32>
    %139 = vector.multi_reduction <maximumf>, %138, %cst_48 [1] : vector<8x8xf32> to vector<8xf32>
    %140 = vector.shape_cast %139 : vector<8xf32> to vector<8x1xf32>
    %141 = vector.broadcast %140 : vector<8x1xf32> to vector<8x8xf32>
    %142 = arith.subf %138, %141 : vector<8x8xf32>
    %143 = math.exp %142 : vector<8x8xf32>
    %cst_49 = arith.constant dense<0.000000e+00> : vector<8xf32>
    %144 = vector.multi_reduction <add>, %143, %cst_49 [1] : vector<8x8xf32> to vector<8xf32>
    %145 = vector.shape_cast %144 : vector<8xf32> to vector<8x1xf32>
    %146 = vector.broadcast %145 : vector<8x1xf32> to vector<8x8xf32>
    %147 = arith.divf %143, %146 : vector<8x8xf32>
    %cst_50 = arith.constant dense<0.000000e+00> : vector<8x8xf32>
    %148 = tpu.matmul %147, %133, %cst_50 {dimension_numbers = #tpu.dot_dimension_numbers<[1], [0], [0], [1], [0, 0, 1, 1], [], []>} : vector<8x8xf32>, vector<8x8xf32>, vector<8x8xf32> -> vector<8x8xf32>
    %149 = vector.extract_strided_slice %13 {offsets = [8, 24], sizes = [8, 8], strides = [1, 1]} : vector<16x128xf32> to vector<8x8xf32>
    %150 = vector.extract_strided_slice %14 {offsets = [8, 56], sizes = [8, 8], strides = [1, 1]} : vector<16x128xf32> to vector<8x8xf32>
    %151 = vector.extract_strided_slice %14 {offsets = [8, 88], sizes = [8, 8], strides = [1, 1]} : vector<16x128xf32> to vector<8x8xf32>
    %cst_51 = arith.constant dense<0.000000e+00> : vector<8x8xf32>
    %152 = tpu.matmul %149, %150, %cst_51 {dimension_numbers = #tpu.dot_dimension_numbers<[1], [1], [0], [0], [0, 0, 1, 0], [], []>} : vector<8x8xf32>, vector<8x8xf32>, vector<8x8xf32> -> vector<8x8xf32>
    %cst_52 = arith.constant 0.353553385 : f32
    %153 = vector.broadcast %cst_52 : f32 to vector<8x8xf32>
    %154 = arith.mulf %152, %153 : vector<8x8xf32>
    %cst_53 = arith.constant -1.000000e+09 : f32
    %155 = vector.broadcast %cst_53 : f32 to vector<8x8xf32>
    %156 = arith.select %94, %155, %154 : vector<8x8xi1>, vector<8x8xf32>
    %cst_54 = arith.constant dense<0xFF800000> : vector<8xf32>
    %157 = vector.multi_reduction <maximumf>, %156, %cst_54 [1] : vector<8x8xf32> to vector<8xf32>
    %158 = vector.shape_cast %157 : vector<8xf32> to vector<8x1xf32>
    %159 = vector.broadcast %158 : vector<8x1xf32> to vector<8x8xf32>
    %160 = arith.subf %156, %159 : vector<8x8xf32>
    %161 = math.exp %160 : vector<8x8xf32>
    %cst_55 = arith.constant dense<0.000000e+00> : vector<8xf32>
    %162 = vector.multi_reduction <add>, %161, %cst_55 [1] : vector<8x8xf32> to vector<8xf32>
    %163 = vector.shape_cast %162 : vector<8xf32> to vector<8x1xf32>
    %164 = vector.broadcast %163 : vector<8x1xf32> to vector<8x8xf32>
    %165 = arith.divf %161, %164 : vector<8x8xf32>
    %cst_56 = arith.constant dense<0.000000e+00> : vector<8x8xf32>
    %166 = tpu.matmul %165, %151, %cst_56 {dimension_numbers = #tpu.dot_dimension_numbers<[1], [0], [0], [1], [0, 0, 1, 1], [], []>} : vector<8x8xf32>, vector<8x8xf32>, vector<8x8xf32> -> vector<8x8xf32>
    %167 = tpu.concatenate %111, %129, %147, %165 in 1 : vector<8x8xf32>, vector<8x8xf32>, vector<8x8xf32>, vector<8x8xf32> -> vector<8x32xf32>
    %168 = tpu.concatenate %112, %130, %148, %166 in 1 : vector<8x8xf32>, vector<8x8xf32>, vector<8x8xf32>, vector<8x8xf32> -> vector<8x32xf32>
    %169 = tpu.concatenate %91, %168 in 0 : vector<8x32xf32>, vector<8x32xf32> -> vector<16x32xf32>
    %170 = tpu.concatenate %90, %167 in 0 : vector<8x32xf32>, vector<8x32xf32> -> vector<16x32xf32>
    %171 = vector.extract_strided_slice %4 {offsets = [0, 96], sizes = [32, 32], strides = [1, 1]} : vector<32x128xf32> to vector<32x32xf32>
    %cst_57 = arith.constant dense<0.000000e+00> : vector<16x32xf32>
    %172 = tpu.matmul %169, %171, %cst_57 {dimension_numbers = #tpu.dot_dimension_numbers<[1], [0], [0], [1], [0, 0, 1, 1], [], []>} : vector<16x32xf32>, vector<32x32xf32>, vector<16x32xf32> -> vector<16x32xf32>
    %173 = arith.addf %172, %1 : vector<16x32xf32>
    %174 = vector.extract_strided_slice %6 {offsets = [0, 0], sizes = [1, 32], strides = [1, 1]} : vector<8x32xf32> to vector<1x32xf32>
    %175 = vector.extract_strided_slice %6 {offsets = [1, 0], sizes = [1, 32], strides = [1, 1]} : vector<8x32xf32> to vector<1x32xf32>
    %cst_58 = arith.constant dense<0.000000e+00> : vector<16xf32>
    %176 = vector.multi_reduction <add>, %173, %cst_58 [1] : vector<16x32xf32> to vector<16xf32>
    %177 = vector.shape_cast %176 : vector<16xf32> to vector<16x1xf32>
    %cst_59 = arith.constant 3.200000e+01 : f32
    %178 = vector.broadcast %cst_59 : f32 to vector<16x1xf32>
    %179 = arith.divf %177, %178 : vector<16x1xf32>
    %180 = vector.broadcast %179 : vector<16x1xf32> to vector<16x32xf32>
    %181 = arith.subf %173, %180 : vector<16x32xf32>
    %182 = arith.mulf %181, %181 : vector<16x32xf32>
    %cst_60 = arith.constant dense<0.000000e+00> : vector<16xf32>
    %183 = vector.multi_reduction <add>, %182, %cst_60 [1] : vector<16x32xf32> to vector<16xf32>
    %184 = vector.shape_cast %183 : vector<16xf32> to vector<16x1xf32>
    %cst_61 = arith.constant 3.200000e+01 : f32
    %185 = vector.broadcast %cst_61 : f32 to vector<16x1xf32>
    %186 = arith.divf %184, %185 : vector<16x1xf32>
    %187 = vector.broadcast %179 : vector<16x1xf32> to vector<16x32xf32>
    %188 = arith.subf %173, %187 : vector<16x32xf32>
    %cst_62 = arith.constant 9.99999997E-7 : f32
    %189 = vector.broadcast %cst_62 : f32 to vector<16x1xf32>
    %190 = arith.addf %186, %189 : vector<16x1xf32>
    %191 = math.rsqrt %190 : vector<16x1xf32>
    %192 = vector.broadcast %191 : vector<16x1xf32> to vector<16x32xf32>
    %193 = arith.mulf %188, %192 : vector<16x32xf32>
    %194 = vector.broadcast %174 : vector<1x32xf32> to vector<16x32xf32>
    %195 = arith.mulf %193, %194 : vector<16x32xf32>
    %196 = vector.broadcast %175 : vector<1x32xf32> to vector<16x32xf32>
    %197 = arith.addf %195, %196 : vector<16x32xf32>
    %198 = vector.extract_strided_slice %6 {offsets = [2, 0], sizes = [1, 32], strides = [1, 1]} : vector<8x32xf32> to vector<1x32xf32>
    %199 = vector.extract_strided_slice %6 {offsets = [3, 0], sizes = [1, 32], strides = [1, 1]} : vector<8x32xf32> to vector<1x32xf32>
    %cst_63 = arith.constant dense<0.000000e+00> : vector<16xf32>
    %200 = vector.multi_reduction <add>, %197, %cst_63 [1] : vector<16x32xf32> to vector<16xf32>
    %201 = vector.shape_cast %200 : vector<16xf32> to vector<16x1xf32>
    %cst_64 = arith.constant 3.200000e+01 : f32
    %202 = vector.broadcast %cst_64 : f32 to vector<16x1xf32>
    %203 = arith.divf %201, %202 : vector<16x1xf32>
    %204 = vector.broadcast %203 : vector<16x1xf32> to vector<16x32xf32>
    %205 = arith.subf %197, %204 : vector<16x32xf32>
    %206 = arith.mulf %205, %205 : vector<16x32xf32>
    %cst_65 = arith.constant dense<0.000000e+00> : vector<16xf32>
    %207 = vector.multi_reduction <add>, %206, %cst_65 [1] : vector<16x32xf32> to vector<16xf32>
    %208 = vector.shape_cast %207 : vector<16xf32> to vector<16x1xf32>
    %cst_66 = arith.constant 3.200000e+01 : f32
    %209 = vector.broadcast %cst_66 : f32 to vector<16x1xf32>
    %210 = arith.divf %208, %209 : vector<16x1xf32>
    %211 = vector.broadcast %203 : vector<16x1xf32> to vector<16x32xf32>
    %212 = arith.subf %197, %211 : vector<16x32xf32>
    %cst_67 = arith.constant 9.99999997E-7 : f32
    %213 = vector.broadcast %cst_67 : f32 to vector<16x1xf32>
    %214 = arith.addf %210, %213 : vector<16x1xf32>
    %215 = math.rsqrt %214 : vector<16x1xf32>
    %216 = vector.broadcast %215 : vector<16x1xf32> to vector<16x32xf32>
    %217 = arith.mulf %212, %216 : vector<16x32xf32>
    %218 = vector.broadcast %198 : vector<1x32xf32> to vector<16x32xf32>
    %219 = arith.mulf %217, %218 : vector<16x32xf32>
    %220 = vector.broadcast %199 : vector<1x32xf32> to vector<16x32xf32>
    %221 = arith.addf %219, %220 : vector<16x32xf32>
    %cst_68 = arith.constant dense<0.000000e+00> : vector<16x64xf32>
    %222 = tpu.matmul %221, %10, %cst_68 {dimension_numbers = #tpu.dot_dimension_numbers<[1], [0], [0], [1], [0, 0, 1, 1], [], []>} : vector<16x32xf32>, vector<32x64xf32>, vector<16x64xf32> -> vector<16x64xf32>
    %223 = vector.broadcast %7 : vector<1x64xf32> to vector<16x64xf32>
    %224 = arith.addf %222, %223 : vector<16x64xf32>
    %cst_69 = arith.constant 0.000000e+00 : f32
    %225 = vector.broadcast %cst_69 : f32 to vector<16x64xf32>
    %226 = arith.maximumf %224, %225 : vector<16x64xf32>
    %cst_70 = arith.constant dense<0.000000e+00> : vector<16x32xf32>
    %227 = tpu.matmul %226, %12, %cst_70 {dimension_numbers = #tpu.dot_dimension_numbers<[1], [0], [0], [1], [0, 0, 1, 1], [], []>} : vector<16x64xf32>, vector<64x32xf32>, vector<16x32xf32> -> vector<16x32xf32>
    %228 = vector.broadcast %8 : vector<1x32xf32> to vector<16x32xf32>
    %229 = arith.addf %227, %228 : vector<16x32xf32>
    %230 = arith.addf %229, %221 : vector<16x32xf32>
    %231 = vector.extract_strided_slice %6 {offsets = [4, 0], sizes = [1, 32], strides = [1, 1]} : vector<8x32xf32> to vector<1x32xf32>
    %232 = vector.extract_strided_slice %6 {offsets = [5, 0], sizes = [1, 32], strides = [1, 1]} : vector<8x32xf32> to vector<1x32xf32>
    %cst_71 = arith.constant dense<0.000000e+00> : vector<16xf32>
    %233 = vector.multi_reduction <add>, %230, %cst_71 [1] : vector<16x32xf32> to vector<16xf32>
    %234 = vector.shape_cast %233 : vector<16xf32> to vector<16x1xf32>
    %cst_72 = arith.constant 3.200000e+01 : f32
    %235 = vector.broadcast %cst_72 : f32 to vector<16x1xf32>
    %236 = arith.divf %234, %235 : vector<16x1xf32>
    %237 = vector.broadcast %236 : vector<16x1xf32> to vector<16x32xf32>
    %238 = arith.subf %230, %237 : vector<16x32xf32>
    %239 = arith.mulf %238, %238 : vector<16x32xf32>
    %cst_73 = arith.constant dense<0.000000e+00> : vector<16xf32>
    %240 = vector.multi_reduction <add>, %239, %cst_73 [1] : vector<16x32xf32> to vector<16xf32>
    %241 = vector.shape_cast %240 : vector<16xf32> to vector<16x1xf32>
    %cst_74 = arith.constant 3.200000e+01 : f32
    %242 = vector.broadcast %cst_74 : f32 to vector<16x1xf32>
    %243 = arith.divf %241, %242 : vector<16x1xf32>
    %244 = vector.broadcast %236 : vector<16x1xf32> to vector<16x32xf32>
    %245 = arith.subf %230, %244 : vector<16x32xf32>
    %cst_75 = arith.constant 9.99999997E-7 : f32
    %246 = vector.broadcast %cst_75 : f32 to vector<16x1xf32>
    %247 = arith.addf %243, %246 : vector<16x1xf32>
    %248 = math.rsqrt %247 : vector<16x1xf32>
    %249 = vector.broadcast %248 : vector<16x1xf32> to vector<16x32xf32>
    %250 = arith.mulf %245, %249 : vector<16x32xf32>
    %251 = vector.broadcast %231 : vector<1x32xf32> to vector<16x32xf32>
    %252 = arith.mulf %250, %251 : vector<16x32xf32>
    %253 = vector.broadcast %232 : vector<1x32xf32> to vector<16x32xf32>
    %254 = arith.addf %252, %253 : vector<16x32xf32>
    %255 = vector.extract_strided_slice %6 {offsets = [6, 0], sizes = [1, 32], strides = [1, 1]} : vector<8x32xf32> to vector<1x32xf32>
    %256 = vector.extract_strided_slice %6 {offsets = [7, 0], sizes = [1, 32], strides = [1, 1]} : vector<8x32xf32> to vector<1x32xf32>
    %cst_76 = arith.constant dense<0.000000e+00> : vector<16xf32>
    %257 = vector.multi_reduction <add>, %254, %cst_76 [1] : vector<16x32xf32> to vector<16xf32>
    %258 = vector.shape_cast %257 : vector<16xf32> to vector<16x1xf32>
    %cst_77 = arith.constant 3.200000e+01 : f32
    %259 = vector.broadcast %cst_77 : f32 to vector<16x1xf32>
    %260 = arith.divf %258, %259 : vector<16x1xf32>
    %261 = vector.broadcast %260 : vector<16x1xf32> to vector<16x32xf32>
    %262 = arith.subf %254, %261 : vector<16x32xf32>
    %263 = arith.mulf %262, %262 : vector<16x32xf32>
    %cst_78 = arith.constant dense<0.000000e+00> : vector<16xf32>
    %264 = vector.multi_reduction <add>, %263, %cst_78 [1] : vector<16x32xf32> to vector<16xf32>
    %265 = vector.shape_cast %264 : vector<16xf32> to vector<16x1xf32>
    %cst_79 = arith.constant 3.200000e+01 : f32
    %266 = vector.broadcast %cst_79 : f32 to vector<16x1xf32>
    %267 = arith.divf %265, %266 : vector<16x1xf32>
    %268 = vector.broadcast %260 : vector<16x1xf32> to vector<16x32xf32>
    %269 = arith.subf %254, %268 : vector<16x32xf32>
    %cst_80 = arith.constant 9.99999997E-7 : f32
    %270 = vector.broadcast %cst_80 : f32 to vector<16x1xf32>
    %271 = arith.addf %267, %270 : vector<16x1xf32>
    %272 = math.rsqrt %271 : vector<16x1xf32>
    %273 = vector.broadcast %272 : vector<16x1xf32> to vector<16x32xf32>
    %274 = arith.mulf %269, %273 : vector<16x32xf32>
    %275 = vector.broadcast %255 : vector<1x32xf32> to vector<16x32xf32>
    %276 = arith.mulf %274, %275 : vector<16x32xf32>
    %277 = vector.broadcast %256 : vector<1x32xf32> to vector<16x32xf32>
    %278 = arith.addf %276, %277 : vector<16x32xf32>
    %cst_81 = arith.constant 0.000000e+00 : f32
    %279 = vector.broadcast %cst_81 : f32 to vector<16x64xf32>
    %280 = tpu.concatenate %278, %170, %279 in 1 : vector<16x32xf32>, vector<16x32xf32>, vector<16x64xf32> -> vector<16x128xf32>
    %c0_82 = arith.constant 0 : index
    %c0_83 = arith.constant 0 : index
    %281 = vector.load %arg3[%c0_82, %c0_83] : memref<16x128xf32, #tpu.memory_space<vmem>>, vector<16x128xf32>
    tpu.vector_store %arg3[%c0_82, %c0_83], %280 {strides = array<i32>} : memref<16x128xf32, #tpu.memory_space<vmem>>, vector<16x128xf32>,
    return
  }
  func.func @transform_0(%arg0: i32) -> (i32, i32) {
    %c0_i32 = arith.constant 0 : i32
    %c0_i32_0 = arith.constant 0 : i32
    %c0_i32_1 = arith.constant 0 : i32
    return %c0_i32, %c0_i32_0 : i32, i32
  }
  func.func @transform_1(%arg0: i32) -> (i32, i32) {
    %c0_i32 = arith.constant 0 : i32
    %c0_i32_0 = arith.constant 0 : i32
    %c0_i32_1 = arith.constant 0 : i32
    return %c0_i32, %c0_i32_0 : i32, i32
  }
  func.func @transform_2(%arg0: i32) -> (i32, i32) {
    %c0_i32 = arith.constant 0 : i32
    %c0_i32_0 = arith.constant 0 : i32
    %c0_i32_1 = arith.constant 0 : i32
    return %c0_i32, %c0_i32_0 : i32, i32
  }
}

</mosaic_0001>

<llo_original>
// kernel: tpu_custom_call.1
$region0: #{tpu_custom_call.1}
  #allocation0 [shape = 'u32[]', space=smem, size = 0x4, offset = 0x4, fixed_abs, tag = 'smem constant byte address 0x4 - core index']
  #allocation1 [shape = 'u32[72,128]{1,0:T(1,128)}', space=vmem, size = 0x9000, scoped, tag = 'internal scratch']
  %s0 = inlined_call_operand.hbm [shape: f32[16,128], index: 0, kind: input, shape index: {}]
  %s1 = inlined_call_operand.hbm [shape: f32[144,128], index: 1, kind: input, shape index: {}]
  %s2 = inlined_call_operand.hbm [shape: f32[16,128], index: 2, kind: output, shape index: {}]
  %s3 = sld [smem:[#allocation0]]
  $region26: #{tpu_custom_call.1} parent=0
    _
  %s5 = ssub.s32 1, %s3
  %s6 = scalar_select 0, %s5, %s3
  $region1: #{tpu_custom_call.1} parent=0
    #allocation2 [shape = 'u8[8192]{0}', space=vmem, size = 0x2000, scoped, tag = 'input window, operand 0, single buffered']
    #allocation3 [shape = 's32[1]{0}', space=sflag, size = 0x4, scoped, tag = 'scoped memory for tpu_custom_call.1']
    #allocation4 [shape = 's32[1]{0}', space=sflag, size = 0x4, scoped, tag = 'scoped memory for tpu_custom_call.1']
    #allocation5 [shape = 'u8[73728]{0}', space=vmem, size = 0x12000, scoped, tag = 'input window, operand 1, single buffered']
    #allocation6 [shape = 's32[1]{0}', space=sflag, size = 0x4, scoped, tag = 'scoped memory for tpu_custom_call.1']
    #allocation7 [shape = 'u8[8192]{0}', space=vmem, size = 0x2000, scoped, tag = 'output window, operand 0, single buffered']
    %7 = vsyncpa [#allocation3], 0
    %8 = vsyncpa [#allocation6], 0
    %9 = vsyncpa [#allocation4], 0
    // Predicated region
    $region2: #{tpu_custom_call.1} parent=1 // pred_check
      _
    $region3: #{tpu_custom_call.1} parent=1 // pred_check_branch
      %11 = sbr.rel (0) target = $region5
    $region4: #{tpu_custom_call.1} parent=1 // pred_region
      %13 = vsyncadd [#allocation3], 0
      %s14 = sshll.u32 %s0, 4
      %s15 = int_to_ptr.hbm [resolvable:$true] %s14
      %s16 = sshll.u32 [#allocation2], 4
      %s17 = int_to_ptr.vmem [resolvable:$true] %s16
      %22 = dma.hbm_to_vmem [thread:$0]  %s15, 256, %s17, [#allocation3], 128, 128, 8
    $region5: #{tpu_custom_call.1} parent=1 // pred_fallthru
      _
    // Predicated region
    $region6: #{tpu_custom_call.1} parent=1 // pred_check
      _
    $region7: #{tpu_custom_call.1} parent=1 // pred_check_branch
      %24 = sbr.rel (0) target = $region9
    $region8: #{tpu_custom_call.1} parent=1 // pred_region
      %26 = vsyncadd [#allocation6], 0
      %s27 = sshll.u32 %s1, 4
      %s28 = int_to_ptr.hbm [resolvable:$true] %s27
      %s29 = sshll.u32 [#allocation5], 4
      %s30 = int_to_ptr.vmem [resolvable:$true] %s29
      %35 = dma.hbm_to_vmem [thread:$0]  %s28, 2304, %s30, [#allocation6], 128, 128, 8
    $region9: #{tpu_custom_call.1} parent=1 // pred_fallthru
      _
    // Predicated region
    $region10: #{tpu_custom_call.1} parent=1 // pred_check
      _
    $region11: #{tpu_custom_call.1} parent=1 // pred_check_branch
      %37 = sbr.rel (0) target = $region13
    $region12: #{tpu_custom_call.1} parent=1 // pred_region
      %39 = dma.done [#allocation3], 256
    $region13: #{tpu_custom_call.1} parent=1 // pred_fallthru
      _
    // Predicated region
    $region14: #{tpu_custom_call.1} parent=1 // pred_check
      _
    $region15: #{tpu_custom_call.1} parent=1 // pred_check_branch
      %41 = sbr.rel (0) target = $region17
    $region16: #{tpu_custom_call.1} parent=1 // pred_region
      %43 = dma.done [#allocation6], 2304
    $region17: #{tpu_custom_call.1} parent=1 // pred_fallthru
      _
    %v44 = vld [vmem:[#allocation2] sm:$0xff]
    %v45 = vld [vmem:[#allocation2 + $0x8] sm:$0xff]
    %v46 = vld [vmem:[#allocation5] sm:$0xff]
    %v47 = vld [vmem:[#allocation5 + $0x8] sm:$0xff]
    %v48 = vld [vmem:[#allocation5 + $0x10] sm:$0xff]
    %v49 = vld [vmem:[#allocation5 + $0x18] sm:$0xff]
    %v50 = vld [vmem:[#allocation5 + $0x20] sm:$0xff]
    %v51 = vld [vmem:[#allocation5 + $0x28] sm:$0xff]
    %v52 = vld [vmem:[#allocation5 + $0x30] sm:$0xff]
    %v53 = vld [vmem:[#allocation5 + $0x38] sm:$0xff]
    %v54 = vld [vmem:[#allocation5 + $0x40] sm:$0xff]
    %v55 = vld [vmem:[#allocation5 + $0x48] sm:$0xff]
    %v56 = vld [vmem:[#allocation5 + $0x50] sm:$0xff]
    %v57 = vld [vmem:[#allocation5 + $0x58] sm:$0xff]
    %v58 = vld [vmem:[#allocation5 + $0x60] sm:$0xff]
    %v59 = vld [vmem:[#allocation5 + $0x68] sm:$0xff]
    %v60 = vld [vmem:[#allocation5 + $0x70] sm:$0xff]
    %v61 = vld [vmem:[#allocation5 + $0x78] sm:$0xff]
    %v62 = vld [vmem:[#allocation5 + $0x80] sm:$0xff]
    %v63 = vld [vmem:[#allocation5 + $0x88] sm:$0xff]
    %vm64 = vcmask 261120
    %v66 = vsel %vm64, %v44, 0
    %v69 = vsel %vm64, %v45, 0
    %71 = vmatpush.msra.mxu0 0.0
    %72 = vmatpush.msra.mxu0 0.0
    %73 = vmatpush.msra.mxu0 0.0
    %74 = vmatpush.msra.mxu0 0.0
    %75 = vmatpush.msra.mxu0 0.0
    %76 = vmatpush.msra.mxu0 0.0
    %77 = vmatpush.msra.mxu0 0.0
    %78 = vmatpush.msra.mxu0 0.0
    %79 = vmatpush.msra.mxu0 0.0
    %80 = vmatpush.msra.mxu0 0.0
    %81 = vmatpush.msra.mxu0 0.0
    %82 = vmatpush.msra.mxu0 0.0
    %83 = vmatpush.msra.mxu0 %v49
    %84 = vmatpush.msra.mxu0 %v48
    %85 = vmatpush.msra.mxu0 %v47
    %86 = vmatpush.msra.mxu0 %v46
    %87 = vmatmul.f32.gmra.mxu0 %v66
    %v88 = vpop.f32.mrf.mxu0
    %v89 = vadd.f32 0.0, %v88
    %90 = vmatmul.f32.gmra.mxu0 %v69
    %v91 = vpop.f32.mrf.mxu0
    %v92 = vadd.f32 0.0, %v91
    %93 = vdwg.mxu0
    %94 = vrot.lane.b32.xlu0 %v44, 96
    %v95 = vpop.permute.xlu0 %94
    %96 = vrot.lane.b32.xlu0 %v45, 96
    %v97 = vpop.permute.xlu0 %96
    %v98 = vsel %vm64, %v95, 0
    %v100 = vsel %vm64, %v97, 0
    %102 = vmatpush.msra.mxu0 0.0
    %103 = vmatpush.msra.mxu0 0.0
    %104 = vmatpush.msra.mxu0 0.0
    %105 = vmatpush.msra.mxu0 0.0
    %106 = vmatpush.msra.mxu0 0.0
    %107 = vmatpush.msra.mxu0 0.0
    %108 = vmatpush.msra.mxu0 0.0
    %109 = vmatpush.msra.mxu0 0.0
    %110 = vmatpush.msra.mxu0 0.0
    %111 = vmatpush.msra.mxu0 0.0
    %112 = vmatpush.msra.mxu0 0.0
    %113 = vmatpush.msra.mxu0 0.0
    %114 = vmatpush.msra.mxu0 %v49
    %115 = vmatpush.msra.mxu0 %v48
    %116 = vmatpush.msra.mxu0 %v47
    %117 = vmatpush.msra.mxu0 %v46
    %118 = vmatmul.f32.gmra.mxu0 %v98
    %v119 = vpop.f32.mrf.mxu0
    %v120 = vadd.f32 0.0, %v119
    %121 = vmatmul.f32.gmra.mxu0 %v100
    %v122 = vpop.f32.mrf.mxu0
    %v123 = vadd.f32 0.0, %v122
    %124 = vdwg.mxu0
    %vm125 = vcmp.eq.f32.partialorder %v44, 0.0
    %127 = vrot.lane.b32.xlu0 %v120, 96
    %v128 = vpop.permute.xlu0 %127
    %vm129 = vcmask 64512
    %v131 = vsel %vm129, %v89, 0
    %v133 = vsel %vm129, %v128, 0
    %135 = vmatpush.xpose.msra.mxu0 0.0
    %136 = vmatpush.xpose.msra.mxu0 0.0
    %137 = vmatpush.xpose.msra.mxu0 0.0
    %138 = vmatpush.xpose.msra.mxu0 0.0
    %139 = vmatpush.xpose.msra.mxu0 0.0
    %140 = vmatpush.xpose.msra.mxu0 0.0
    %141 = vmatpush.xpose.msra.mxu0 0.0
    %142 = vmatpush.xpose.msra.mxu0 0.0
    %143 = vmatpush.xpose.msra.mxu0 0.0
    %144 = vmatpush.xpose.msra.mxu0 0.0
    %145 = vmatpush.xpose.msra.mxu0 0.0
    %146 = vmatpush.xpose.msra.mxu0 0.0
    %147 = vmatpush.xpose.msra.mxu0 0.0
    %148 = vmatpush.xpose.msra.mxu0 0.0
    %149 = vmatpush.xpose.msra.mxu0 0.0
    %150 = vmatpush.xpose.msra.mxu0 %v133
    %151 = vmatmul.f32.gmra.mxu0 %v131
    %v152 = vpop.f32.mrf.mxu0
    %v153 = vadd.f32 0.0, %v152
    %154 = vdwg.mxu0
    %v155 = vmul.f32 %v153, 0.35355338
    %157 = vrot.lane.b32.xlu0 %v155, 64
    %v158 = vpop.permute.xlu0 %157
    %v160 = vsel %vm125, -1e+09, %v158
    %vm161 = vcmask 589312
    %v162 = vsel %vm161, %v160, -inf
    %163 = vmax.xlane.f32.xlu0 %v162
    %v164 = vpop.xlane.xlu0 %163
    %v165 = vsub.f32 %v160, %v164
    %v166 = vmul.f32 %v165, 1.442695
    %v167 = vpow.pop %v166
    %169 = vrot.lane.b32.xlu0 %v167, 64
    %v170 = vpop.permute.xlu0 %169
    %v172 = vsel %vm129, %v170, 0.0
    %173 = vadd.xlane.f32.xlu0 %v172
    %v174 = vpop.xlane.xlu0 %173
    %v175 = vrcp.pop %v174
    %v176 = vmul.f32 %v174, %v175
    %v177 = vsub.f32 1.0, %v176
    %v178 = vmul.f32 %v175, %v177
    %v179 = vadd.f32 %v175, %v178
    %vm180 = vweird.f32 %v174
    %vm181 = vweird.f32 %v175
    %vm182 = vmor %vm180, %vm181
    %v183 = vsel %vm182, %v175, %v179
    %v184 = vand.u32 2147483647, %v174
    %vm185 = vcmp.eq.f32.partialorder %v184, 8.507059e+37
    %v186 = vand.u32 %v174, 2147483648
    %v187 = vor.u32 1.1754944e-38, %v186
    %v188 = vsel %vm185, %v187, %v183
    %v189 = vmul.f32 %v167, %v188
    %191 = vrot.lane.b32.xlu0 %v189, 64
    %v192 = vpop.permute.xlu0 %191
    %193 = vrot.lane.b32.xlu0 %v120, 64
    %v194 = vpop.permute.xlu0 %193
    %v196 = vsel %vm129, %v192, 0
    %198 = vmatpush.msra.mxu0 0.0
    %199 = vmatpush.msra.mxu0 0.0
    %200 = vmatpush.msra.mxu0 0.0
    %201 = vmatpush.msra.mxu0 0.0
    %202 = vmatpush.msra.mxu0 0.0
    %203 = vmatpush.msra.mxu0 0.0
    %204 = vmatpush.msra.mxu0 0.0
    %205 = vmatpush.msra.mxu0 0.0
    %206 = vmatpush.msra.mxu0 0.0
    %207 = vmatpush.msra.mxu0 0.0
    %208 = vmatpush.msra.mxu0 0.0
    %209 = vmatpush.msra.mxu0 0.0
    %210 = vmatpush.msra.mxu0 0.0
    %211 = vmatpush.msra.mxu0 0.0
    %212 = vmatpush.msra.mxu0 0.0
    %213 = vmatpush.msra.mxu0 %v194
    %214 = vmatmul.f32.gmra.mxu0 %v196
    %v215 = vpop.f32.mrf.mxu0
    %v216 = vadd.f32 0.0, %v215
    %217 = vdwg.mxu0
    %218 = vrot.lane.b32.xlu0 %v89, 120
    %v219 = vpop.permute.xlu0 %218
    %220 = vrot.lane.b32.xlu0 %v120, 88
    %v221 = vpop.permute.xlu0 %220
    %v222 = vsel %vm129, %v219, 0
    %v224 = vsel %vm129, %v221, 0
    %226 = vmatpush.xpose.msra.mxu0 0.0
    %227 = vmatpush.xpose.msra.mxu0 0.0
    %228 = vmatpush.xpose.msra.mxu0 0.0
    %229 = vmatpush.xpose.msra.mxu0 0.0
    %230 = vmatpush.xpose.msra.mxu0 0.0
    %231 = vmatpush.xpose.msra.mxu0 0.0
    %232 = vmatpush.xpose.msra.mxu0 0.0
    %233 = vmatpush.xpose.msra.mxu0 0.0
    %234 = vmatpush.xpose.msra.mxu0 0.0
    %235 = vmatpush.xpose.msra.mxu0 0.0
    %236 = vmatpush.xpose.msra.mxu0 0.0
    %237 = vmatpush.xpose.msra.mxu0 0.0
    %238 = vmatpush.xpose.msra.mxu0 0.0
    %239 = vmatpush.xpose.msra.mxu0 0.0
    %240 = vmatpush.xpose.msra.mxu0 0.0
    %241 = vmatpush.xpose.msra.mxu0 %v224
    %242 = vmatmul.f32.gmra.mxu0 %v222
    %v243 = vpop.f32.mrf.mxu0
    %v244 = vadd.f32 0.0, %v243
    %245 = vdwg.mxu0
    %v246 = vmul.f32 %v244, 0.35355338
    %248 = vrot.lane.b32.xlu0 %v246, 64
    %v249 = vpop.permute.xlu0 %248
    %v251 = vsel %vm125, -1e+09, %v249
    %v252 = vsel %vm161, %v251, -inf
    %253 = vmax.xlane.f32.xlu0 %v252
    %v254 = vpop.xlane.xlu0 %253
    %v255 = vsub.f32 %v251, %v254
    %v256 = vmul.f32 %v255, 1.442695
    %v257 = vpow.pop %v256
    %259 = vrot.lane.b32.xlu0 %v257, 64
    %v260 = vpop.permute.xlu0 %259
    %v262 = vsel %vm129, %v260, 0.0
    %263 = vadd.xlane.f32.xlu0 %v262
    %v264 = vpop.xlane.xlu0 %263
    %v265 = vrcp.pop %v264
    %v266 = vmul.f32 %v264, %v265
    %v267 = vsub.f32 1.0, %v266
    %v268 = vmul.f32 %v265, %v267
    %v269 = vadd.f32 %v265, %v268
    %vm270 = vweird.f32 %v264
    %vm271 = vweird.f32 %v265
    %vm272 = vmor %vm270, %vm271
    %v273 = vsel %vm272, %v265, %v269
    %v274 = vand.u32 2147483647, %v264
    %vm275 = vcmp.eq.f32.partialorder %v274, 8.507059e+37
    %v276 = vand.u32 %v264, 2147483648
    %v277 = vor.u32 1.1754944e-38, %v276
    %v278 = vsel %vm275, %v277, %v273
    %v279 = vmul.f32 %v257, %v278
    %281 = vrot.lane.b32.xlu0 %v279, 64
    %v282 = vpop.permute.xlu0 %281
    %283 = vrot.lane.b32.xlu0 %v120, 56
    %v284 = vpop.permute.xlu0 %283
    %v286 = vsel %vm129, %v282, 0
    %288 = vmatpush.msra.mxu0 0.0
    %289 = vmatpush.msra.mxu0 0.0
    %290 = vmatpush.msra.mxu0 0.0
    %291 = vmatpush.msra.mxu0 0.0
    %292 = vmatpush.msra.mxu0 0.0
    %293 = vmatpush.msra.mxu0 0.0
    %294 = vmatpush.msra.mxu0 0.0
    %295 = vmatpush.msra.mxu0 0.0
    %296 = vmatpush.msra.mxu0 0.0
    %297 = vmatpush.msra.mxu0 0.0
    %298 = vmatpush.msra.mxu0 0.0
    %299 = vmatpush.msra.mxu0 0.0
    %300 = vmatpush.msra.mxu0 0.0
    %301 = vmatpush.msra.mxu0 0.0
    %302 = vmatpush.msra.mxu0 0.0
    %303 = vmatpush.msra.mxu0 %v284
    %304 = vmatmul.f32.gmra.mxu0 %v286
    %v305 = vpop.f32.mrf.mxu0
    %v306 = vadd.f32 0.0, %v305
    %307 = vdwg.mxu0
    %308 = vrot.lane.b32.xlu0 %v89, 112
    %v309 = vpop.permute.xlu0 %308
    %310 = vrot.lane.b32.xlu0 %v120, 80
    %v311 = vpop.permute.xlu0 %310
    %v312 = vsel %vm129, %v309, 0
    %v314 = vsel %vm129, %v311, 0
    %316 = vmatpush.xpose.msra.mxu0 0.0
    %317 = vmatpush.xpose.msra.mxu0 0.0
    %318 = vmatpush.xpose.msra.mxu0 0.0
    %319 = vmatpush.xpose.msra.mxu0 0.0
    %320 = vmatpush.xpose.msra.mxu0 0.0
    %321 = vmatpush.xpose.msra.mxu0 0.0
    %322 = vmatpush.xpose.msra.mxu0 0.0
    %323 = vmatpush.xpose.msra.mxu0 0.0
    %324 = vmatpush.xpose.msra.mxu0 0.0
    %325 = vmatpush.xpose.msra.mxu0 0.0
    %326 = vmatpush.xpose.msra.mxu0 0.0
    %327 = vmatpush.xpose.msra.mxu0 0.0
    %328 = vmatpush.xpose.msra.mxu0 0.0
    %329 = vmatpush.xpose.msra.mxu0 0.0
    %330 = vmatpush.xpose.msra.mxu0 0.0
    %331 = vmatpush.xpose.msra.mxu0 %v314
    %332 = vmatmul.f32.gmra.mxu0 %v312
    %v333 = vpop.f32.mrf.mxu0
    %v334 = vadd.f32 0.0, %v333
    %335 = vdwg.mxu0
    %v336 = vmul.f32 %v334, 0.35355338
    %338 = vrot.lane.b32.xlu0 %v336, 64
    %v339 = vpop.permute.xlu0 %338
    %v341 = vsel %vm125, -1e+09, %v339
    %v342 = vsel %vm161, %v341, -inf
    %343 = vmax.xlane.f32.xlu0 %v342
    %v344 = vpop.xlane.xlu0 %343
    %v345 = vsub.f32 %v341, %v344
    %v346 = vmul.f32 %v345, 1.442695
    %v347 = vpow.pop %v346
    %349 = vrot.lane.b32.xlu0 %v347, 64
    %v350 = vpop.permute.xlu0 %349
    %v352 = vsel %vm129, %v350, 0.0
    %353 = vadd.xlane.f32.xlu0 %v352
    %v354 = vpop.xlane.xlu0 %353
    %v355 = vrcp.pop %v354
    %v356 = vmul.f32 %v354, %v355
    %v357 = vsub.f32 1.0, %v356
    %v358 = vmul.f32 %v355, %v357
    %v359 = vadd.f32 %v355, %v358
    %vm360 = vweird.f32 %v354
    %vm361 = vweird.f32 %v355
    %vm362 = vmor %vm360, %vm361
    %v363 = vsel %vm362, %v355, %v359
    %v364 = vand.u32 2147483647, %v354
    %vm365 = vcmp.eq.f32.partialorder %v364, 8.507059e+37
    %v366 = vand.u32 %v354, 2147483648
    %v367 = vor.u32 1.1754944e-38, %v366
    %v368 = vsel %vm365, %v367, %v363
    %v369 = vmul.f32 %v347, %v368
    %371 = vrot.lane.b32.xlu0 %v369, 64
    %v372 = vpop.permute.xlu0 %371
    %373 = vrot.lane.b32.xlu0 %v120, 48
    %v374 = vpop.permute.xlu0 %373
    %v376 = vsel %vm129, %v372, 0
    %378 = vmatpush.msra.mxu0 0.0
    %379 = vmatpush.msra.mxu0 0.0
    %380 = vmatpush.msra.mxu0 0.0
    %381 = vmatpush.msra.mxu0 0.0
    %382 = vmatpush.msra.mxu0 0.0
    %383 = vmatpush.msra.mxu0 0.0
    %384 = vmatpush.msra.mxu0 0.0
    %385 = vmatpush.msra.mxu0 0.0
    %386 = vmatpush.msra.mxu0 0.0
    %387 = vmatpush.msra.mxu0 0.0
    %388 = vmatpush.msra.mxu0 0.0
    %389 = vmatpush.msra.mxu0 0.0
    %390 = vmatpush.msra.mxu0 0.0
    %391 = vmatpush.msra.mxu0 0.0
    %392 = vmatpush.msra.mxu0 0.0
    %393 = vmatpush.msra.mxu0 %v374
    %394 = vmatmul.f32.gmra.mxu0 %v376
    %v395 = vpop.f32.mrf.mxu0
    %v396 = vadd.f32 0.0, %v395
    %397 = vdwg.mxu0
    %398 = vrot.lane.b32.xlu0 %v89, 104
    %v399 = vpop.permute.xlu0 %398
    %400 = vrot.lane.b32.xlu0 %v120, 72
    %v401 = vpop.permute.xlu0 %400
    %v402 = vsel %vm129, %v399, 0
    %v404 = vsel %vm129, %v401, 0
    %406 = vmatpush.xpose.msra.mxu0 0.0
    %407 = vmatpush.xpose.msra.mxu0 0.0
    %408 = vmatpush.xpose.msra.mxu0 0.0
    %409 = vmatpush.xpose.msra.mxu0 0.0
    %410 = vmatpush.xpose.msra.mxu0 0.0
    %411 = vmatpush.xpose.msra.mxu0 0.0
    %412 = vmatpush.xpose.msra.mxu0 0.0
    %413 = vmatpush.xpose.msra.mxu0 0.0
    %414 = vmatpush.xpose.msra.mxu0 0.0
    %415 = vmatpush.xpose.msra.mxu0 0.0
    %416 = vmatpush.xpose.msra.mxu0 0.0
    %417 = vmatpush.xpose.msra.mxu0 0.0
    %418 = vmatpush.xpose.msra.mxu0 0.0
    %419 = vmatpush.xpose.msra.mxu0 0.0
    %420 = vmatpush.xpose.msra.mxu0 0.0
    %421 = vmatpush.xpose.msra.mxu0 %v404
    %422 = vmatmul.f32.gmra.mxu0 %v402
    %v423 = vpop.f32.mrf.mxu0
    %v424 = vadd.f32 0.0, %v423
    %425 = vdwg.mxu0
    %v426 = vmul.f32 %v424, 0.35355338
    %428 = vrot.lane.b32.xlu0 %v426, 64
    %v429 = vpop.permute.xlu0 %428
    %v431 = vsel %vm125, -1e+09, %v429
    %v432 = vsel %vm161, %v431, -inf
    %433 = vmax.xlane.f32.xlu0 %v432
    %v434 = vpop.xlane.xlu0 %433
    %v435 = vsub.f32 %v431, %v434
    %v436 = vmul.f32 %v435, 1.442695
    %v437 = vpow.pop %v436
    %439 = vrot.lane.b32.xlu0 %v437, 64
    %v440 = vpop.permute.xlu0 %439
    %v442 = vsel %vm129, %v440, 0.0
    %443 = vadd.xlane.f32.xlu0 %v442
    %v444 = vpop.xlane.xlu0 %443
    %v445 = vrcp.pop %v444
    %v446 = vmul.f32 %v444, %v445
    %v447 = vsub.f32 1.0, %v446
    %v448 = vmul.f32 %v445, %v447
    %v449 = vadd.f32 %v445, %v448
    %vm450 = vweird.f32 %v444
    %vm451 = vweird.f32 %v445
    %vm452 = vmor %vm450, %vm451
    %v453 = vsel %vm452, %v445, %v449
    %v454 = vand.u32 2147483647, %v444
    %vm455 = vcmp.eq.f32.partialorder %v454, 8.507059e+37
    %v456 = vand.u32 %v444, 2147483648
    %v457 = vor.u32 1.1754944e-38, %v456
    %v458 = vsel %vm455, %v457, %v453
    %v459 = vmul.f32 %v437, %v458
    %461 = vrot.lane.b32.xlu0 %v459, 64
    %v462 = vpop.permute.xlu0 %461
    %463 = vrot.lane.b32.xlu0 %v120, 40
    %v464 = vpop.permute.xlu0 %463
    %v466 = vsel %vm129, %v462, 0
    %468 = vmatpush.msra.mxu0 0.0
    %469 = vmatpush.msra.mxu0 0.0
    %470 = vmatpush.msra.mxu0 0.0
    %471 = vmatpush.msra.mxu0 0.0
    %472 = vmatpush.msra.mxu0 0.0
    %473 = vmatpush.msra.mxu0 0.0
    %474 = vmatpush.msra.mxu0 0.0
    %475 = vmatpush.msra.mxu0 0.0
    %476 = vmatpush.msra.mxu0 0.0
    %477 = vmatpush.msra.mxu0 0.0
    %478 = vmatpush.msra.mxu0 0.0
    %479 = vmatpush.msra.mxu0 0.0
    %480 = vmatpush.msra.mxu0 0.0
    %481 = vmatpush.msra.mxu0 0.0
    %482 = vmatpush.msra.mxu0 0.0
    %483 = vmatpush.msra.mxu0 %v464
    %484 = vmatmul.f32.gmra.mxu0 %v466
    %v485 = vpop.f32.mrf.mxu0
    %v486 = vadd.f32 0.0, %v485
    %487 = vdwg.mxu0
    %489 = vrot.lane.b32.xlu0 %v279, 72
    %v490 = vpop.permute.xlu0 %489
    %492 = vrot.lane.b32.xlu0 %v369, 80
    %v493 = vpop.permute.xlu0 %492
    %495 = vrot.lane.b32.xlu0 %v459, 88
    %v496 = vpop.permute.xlu0 %495
    %v498 = vsel %vm129, %v192, %v490
    %vm499 = vcmask 130048
    %v500 = vsel %vm499, %v498, %v493
    %vm501 = vcmask 195584
    %v502 = vsel %vm501, %v500, %v496
    %504 = vrot.lane.b32.xlu0 %v306, 8
    %v505 = vpop.permute.xlu0 %504
    %508 = vrot.lane.b32.xlu0 %v396, 16
    %v509 = vpop.permute.xlu0 %508
    %512 = vrot.lane.b32.xlu0 %v486, 24
    %v513 = vpop.permute.xlu0 %512
    %v515 = vsel %vm129, %v216, %v505
    %v516 = vsel %vm499, %v515, %v509
    %v517 = vsel %vm501, %v516, %v513
    %vm518 = vcmp.eq.f32.partialorder %v45, 0.0
    %520 = vrot.lane.b32.xlu0 %v123, 96
    %v521 = vpop.permute.xlu0 %520
    %v523 = vsel %vm129, %v92, 0
    %v525 = vsel %vm129, %v521, 0
    %527 = vmatpush.xpose.msra.mxu0 0.0
    %528 = vmatpush.xpose.msra.mxu0 0.0
    %529 = vmatpush.xpose.msra.mxu0 0.0
    %530 = vmatpush.xpose.msra.mxu0 0.0
    %531 = vmatpush.xpose.msra.mxu0 0.0
    %532 = vmatpush.xpose.msra.mxu0 0.0
    %533 = vmatpush.xpose.msra.mxu0 0.0
    %534 = vmatpush.xpose.msra.mxu0 0.0
    %535 = vmatpush.xpose.msra.mxu0 0.0
    %536 = vmatpush.xpose.msra.mxu0 0.0
    %537 = vmatpush.xpose.msra.mxu0 0.0
    %538 = vmatpush.xpose.msra.mxu0 0.0
    %539 = vmatpush.xpose.msra.mxu0 0.0
    %540 = vmatpush.xpose.msra.mxu0 0.0
    %541 = vmatpush.xpose.msra.mxu0 0.0
    %542 = vmatpush.xpose.msra.mxu0 %v525
    %543 = vmatmul.f32.gmra.mxu0 %v523
    %v544 = vpop.f32.mrf.mxu0
    %v545 = vadd.f32 0.0, %v544
    %546 = vdwg.mxu0
    %v547 = vmul.f32 %v545, 0.35355338
    %549 = vrot.lane.b32.xlu0 %v547, 64
    %v550 = vpop.permute.xlu0 %549
    %v552 = vsel %vm518, -1e+09, %v550
    %v553 = vsel %vm161, %v552, -inf
    %554 = vmax.xlane.f32.xlu0 %v553
    %v555 = vpop.xlane.xlu0 %554
    %v556 = vsub.f32 %v552, %v555
    %v557 = vmul.f32 %v556, 1.442695
    %v558 = vpow.pop %v557
    %560 = vrot.lane.b32.xlu0 %v558, 64
    %v561 = vpop.permute.xlu0 %560
    %v563 = vsel %vm129, %v561, 0.0
    %564 = vadd.xlane.f32.xlu0 %v563
    %v565 = vpop.xlane.xlu0 %564
    %v566 = vrcp.pop %v565
    %v567 = vmul.f32 %v565, %v566
    %v568 = vsub.f32 1.0, %v567
    %v569 = vmul.f32 %v566, %v568
    %v570 = vadd.f32 %v566, %v569
    %vm571 = vweird.f32 %v565
    %vm572 = vweird.f32 %v566
    %vm573 = vmor %vm571, %vm572
    %v574 = vsel %vm573, %v566, %v570
    %v575 = vand.u32 2147483647, %v565
    %vm576 = vcmp.eq.f32.partialorder %v575, 8.507059e+37
    %v577 = vand.u32 %v565, 2147483648
    %v578 = vor.u32 1.1754944e-38, %v577
    %v579 = vsel %vm576, %v578, %v574
    %v580 = vmul.f32 %v558, %v579
    %582 = vrot.lane.b32.xlu0 %v580, 64
    %v583 = vpop.permute.xlu0 %582
    %584 = vrot.lane.b32.xlu0 %v123, 64
    %v585 = vpop.permute.xlu0 %584
    %v587 = vsel %vm129, %v583, 0
    %589 = vmatpush.msra.mxu0 0.0
    %590 = vmatpush.msra.mxu0 0.0
    %591 = vmatpush.msra.mxu0 0.0
    %592 = vmatpush.msra.mxu0 0.0
    %593 = vmatpush.msra.mxu0 0.0
    %594 = vmatpush.msra.mxu0 0.0
    %595 = vmatpush.msra.mxu0 0.0
    %596 = vmatpush.msra.mxu0 0.0
    %597 = vmatpush.msra.mxu0 0.0
    %598 = vmatpush.msra.mxu0 0.0
    %599 = vmatpush.msra.mxu0 0.0
    %600 = vmatpush.msra.mxu0 0.0
    %601 = vmatpush.msra.mxu0 0.0
    %602 = vmatpush.msra.mxu0 0.0
    %603 = vmatpush.msra.mxu0 0.0
    %604 = vmatpush.msra.mxu0 %v585
    %605 = vmatmul.f32.gmra.mxu0 %v587
    %v606 = vpop.f32.mrf.mxu0
    %v607 = vadd.f32 0.0, %v606
    %608 = vdwg.mxu0
    %609 = vrot.lane.b32.xlu0 %v92, 120
    %v610 = vpop.permute.xlu0 %609
    %611 = vrot.lane.b32.xlu0 %v123, 88
    %v612 = vpop.permute.xlu0 %611
    %v613 = vsel %vm129, %v610, 0
    %v615 = vsel %vm129, %v612, 0
    %617 = vmatpush.xpose.msra.mxu0 0.0
    %618 = vmatpush.xpose.msra.mxu0 0.0
    %619 = vmatpush.xpose.msra.mxu0 0.0
    %620 = vmatpush.xpose.msra.mxu0 0.0
    %621 = vmatpush.xpose.msra.mxu0 0.0
    %622 = vmatpush.xpose.msra.mxu0 0.0
    %623 = vmatpush.xpose.msra.mxu0 0.0
    %624 = vmatpush.xpose.msra.mxu0 0.0
    %625 = vmatpush.xpose.msra.mxu0 0.0
    %626 = vmatpush.xpose.msra.mxu0 0.0
    %627 = vmatpush.xpose.msra.mxu0 0.0
    %628 = vmatpush.xpose.msra.mxu0 0.0
    %629 = vmatpush.xpose.msra.mxu0 0.0
    %630 = vmatpush.xpose.msra.mxu0 0.0
    %631 = vmatpush.xpose.msra.mxu0 0.0
    %632 = vmatpush.xpose.msra.mxu0 %v615
    %633 = vmatmul.f32.gmra.mxu0 %v613
    %v634 = vpop.f32.mrf.mxu0
    %v635 = vadd.f32 0.0, %v634
    %636 = vdwg.mxu0
    %v637 = vmul.f32 %v635, 0.35355338
    %639 = vrot.lane.b32.xlu0 %v637, 64
    %v640 = vpop.permute.xlu0 %639
    %v642 = vsel %vm518, -1e+09, %v640
    %v643 = vsel %vm161, %v642, -inf
    %644 = vmax.xlane.f32.xlu0 %v643
    %v645 = vpop.xlane.xlu0 %644
    %v646 = vsub.f32 %v642, %v645
    %v647 = vmul.f32 %v646, 1.442695
    %v648 = vpow.pop %v647
    %650 = vrot.lane.b32.xlu0 %v648, 64
    %v651 = vpop.permute.xlu0 %650
    %v653 = vsel %vm129, %v651, 0.0
    %654 = vadd.xlane.f32.xlu0 %v653
    %v655 = vpop.xlane.xlu0 %654
    %v656 = vrcp.pop %v655
    %v657 = vmul.f32 %v655, %v656
    %v658 = vsub.f32 1.0, %v657
    %v659 = vmul.f32 %v656, %v658
    %v660 = vadd.f32 %v656, %v659
    %vm661 = vweird.f32 %v655
    %vm662 = vweird.f32 %v656
    %vm663 = vmor %vm661, %vm662
    %v664 = vsel %vm663, %v656, %v660
    %v665 = vand.u32 2147483647, %v655
    %vm666 = vcmp.eq.f32.partialorder %v665, 8.507059e+37
    %v667 = vand.u32 %v655, 2147483648
    %v668 = vor.u32 1.1754944e-38, %v667
    %v669 = vsel %vm666, %v668, %v664
    %v670 = vmul.f32 %v648, %v669
    %672 = vrot.lane.b32.xlu0 %v670, 64
    %v673 = vpop.permute.xlu0 %672
    %674 = vrot.lane.b32.xlu0 %v123, 56
    %v675 = vpop.permute.xlu0 %674
    %v677 = vsel %vm129, %v673, 0
    %679 = vmatpush.msra.mxu0 0.0
    %680 = vmatpush.msra.mxu0 0.0
    %681 = vmatpush.msra.mxu0 0.0
    %682 = vmatpush.msra.mxu0 0.0
    %683 = vmatpush.msra.mxu0 0.0
    %684 = vmatpush.msra.mxu0 0.0
    %685 = vmatpush.msra.mxu0 0.0
    %686 = vmatpush.msra.mxu0 0.0
    %687 = vmatpush.msra.mxu0 0.0
    %688 = vmatpush.msra.mxu0 0.0
    %689 = vmatpush.msra.mxu0 0.0
    %690 = vmatpush.msra.mxu0 0.0
    %691 = vmatpush.msra.mxu0 0.0
    %692 = vmatpush.msra.mxu0 0.0
    %693 = vmatpush.msra.mxu0 0.0
    %694 = vmatpush.msra.mxu0 %v675
    %695 = vmatmul.f32.gmra.mxu0 %v677
    %v696 = vpop.f32.mrf.mxu0
    %v697 = vadd.f32 0.0, %v696
    %698 = vdwg.mxu0
    %699 = vrot.lane.b32.xlu0 %v92, 112
    %v700 = vpop.permute.xlu0 %699
    %701 = vrot.lane.b32.xlu0 %v123, 80
    %v702 = vpop.permute.xlu0 %701
    %v703 = vsel %vm129, %v700, 0
    %v705 = vsel %vm129, %v702, 0
    %707 = vmatpush.xpose.msra.mxu0 0.0
    %708 = vmatpush.xpose.msra.mxu0 0.0
    %709 = vmatpush.xpose.msra.mxu0 0.0
    %710 = vmatpush.xpose.msra.mxu0 0.0
    %711 = vmatpush.xpose.msra.mxu0 0.0
    %712 = vmatpush.xpose.msra.mxu0 0.0
    %713 = vmatpush.xpose.msra.mxu0 0.0
    %714 = vmatpush.xpose.msra.mxu0 0.0
    %715 = vmatpush.xpose.msra.mxu0 0.0
    %716 = vmatpush.xpose.msra.mxu0 0.0
    %717 = vmatpush.xpose.msra.mxu0 0.0
    %718 = vmatpush.xpose.msra.mxu0 0.0
    %719 = vmatpush.xpose.msra.mxu0 0.0
    %720 = vmatpush.xpose.msra.mxu0 0.0
    %721 = vmatpush.xpose.msra.mxu0 0.0
    %722 = vmatpush.xpose.msra.mxu0 %v705
    %723 = vmatmul.f32.gmra.mxu0 %v703
    %v724 = vpop.f32.mrf.mxu0
    %v725 = vadd.f32 0.0, %v724
    %726 = vdwg.mxu0
    %v727 = vmul.f32 %v725, 0.35355338
    %729 = vrot.lane.b32.xlu0 %v727, 64
    %v730 = vpop.permute.xlu0 %729
    %v732 = vsel %vm518, -1e+09, %v730
    %v733 = vsel %vm161, %v732, -inf
    %734 = vmax.xlane.f32.xlu0 %v733
    %v735 = vpop.xlane.xlu0 %734
    %v736 = vsub.f32 %v732, %v735
    %v737 = vmul.f32 %v736, 1.442695
    %v738 = vpow.pop %v737
    %740 = vrot.lane.b32.xlu0 %v738, 64
    %v741 = vpop.permute.xlu0 %740
    %v743 = vsel %vm129, %v741, 0.0
    %744 = vadd.xlane.f32.xlu0 %v743
    %v745 = vpop.xlane.xlu0 %744
    %v746 = vrcp.pop %v745
    %v747 = vmul.f32 %v745, %v746
    %v748 = vsub.f32 1.0, %v747
    %v749 = vmul.f32 %v746, %v748
    %v750 = vadd.f32 %v746, %v749
    %vm751 = vweird.f32 %v745
    %vm752 = vweird.f32 %v746
    %vm753 = vmor %vm751, %vm752
    %v754 = vsel %vm753, %v746, %v750
    %v755 = vand.u32 2147483647, %v745
    %vm756 = vcmp.eq.f32.partialorder %v755, 8.507059e+37
    %v757 = vand.u32 %v745, 2147483648
    %v758 = vor.u32 1.1754944e-38, %v757
    %v759 = vsel %vm756, %v758, %v754
    %v760 = vmul.f32 %v738, %v759
    %762 = vrot.lane.b32.xlu0 %v760, 64
    %v763 = vpop.permute.xlu0 %762
    %764 = vrot.lane.b32.xlu0 %v123, 48
    %v765 = vpop.permute.xlu0 %764
    %v767 = vsel %vm129, %v763, 0
    %769 = vmatpush.msra.mxu0 0.0
    %770 = vmatpush.msra.mxu0 0.0
    %771 = vmatpush.msra.mxu0 0.0
    %772 = vmatpush.msra.mxu0 0.0
    %773 = vmatpush.msra.mxu0 0.0
    %774 = vmatpush.msra.mxu0 0.0
    %775 = vmatpush.msra.mxu0 0.0
    %776 = vmatpush.msra.mxu0 0.0
    %777 = vmatpush.msra.mxu0 0.0
    %778 = vmatpush.msra.mxu0 0.0
    %779 = vmatpush.msra.mxu0 0.0
    %780 = vmatpush.msra.mxu0 0.0
    %781 = vmatpush.msra.mxu0 0.0
    %782 = vmatpush.msra.mxu0 0.0
    %783 = vmatpush.msra.mxu0 0.0
    %784 = vmatpush.msra.mxu0 %v765
    %785 = vmatmul.f32.gmra.mxu0 %v767
    %v786 = vpop.f32.mrf.mxu0
    %v787 = vadd.f32 0.0, %v786
    %788 = vdwg.mxu0
    %789 = vrot.lane.b32.xlu0 %v92, 104
    %v790 = vpop.permute.xlu0 %789
    %791 = vrot.lane.b32.xlu0 %v123, 72
    %v792 = vpop.permute.xlu0 %791
    %v793 = vsel %vm129, %v790, 0
    %v795 = vsel %vm129, %v792, 0
    %797 = vmatpush.xpose.msra.mxu0 0.0
    %798 = vmatpush.xpose.msra.mxu0 0.0
    %799 = vmatpush.xpose.msra.mxu0 0.0
    %800 = vmatpush.xpose.msra.mxu0 0.0
    %801 = vmatpush.xpose.msra.mxu0 0.0
    %802 = vmatpush.xpose.msra.mxu0 0.0
    %803 = vmatpush.xpose.msra.mxu0 0.0
    %804 = vmatpush.xpose.msra.mxu0 0.0
    %805 = vmatpush.xpose.msra.mxu0 0.0
    %806 = vmatpush.xpose.msra.mxu0 0.0
    %807 = vmatpush.xpose.msra.mxu0 0.0
    %808 = vmatpush.xpose.msra.mxu0 0.0
    %809 = vmatpush.xpose.msra.mxu0 0.0
    %810 = vmatpush.xpose.msra.mxu0 0.0
    %811 = vmatpush.xpose.msra.mxu0 0.0
    %812 = vmatpush.xpose.msra.mxu0 %v795
    %813 = vmatmul.f32.gmra.mxu0 %v793
    %v814 = vpop.f32.mrf.mxu0
    %v815 = vadd.f32 0.0, %v814
    %816 = vdwg.mxu0
    %v817 = vmul.f32 %v815, 0.35355338
    %819 = vrot.lane.b32.xlu0 %v817, 64
    %v820 = vpop.permute.xlu0 %819
    %v822 = vsel %vm518, -1e+09, %v820
    %v823 = vsel %vm161, %v822, -inf
    %824 = vmax.xlane.f32.xlu0 %v823
    %v825 = vpop.xlane.xlu0 %824
    %v826 = vsub.f32 %v822, %v825
    %v827 = vmul.f32 %v826, 1.442695
    %v828 = vpow.pop %v827
    %830 = vrot.lane.b32.xlu0 %v828, 64
    %v831 = vpop.permute.xlu0 %830
    %v833 = vsel %vm129, %v831, 0.0
    %834 = vadd.xlane.f32.xlu0 %v833
    %v835 = vpop.xlane.xlu0 %834
    %v836 = vrcp.pop %v835
    %v837 = vmul.f32 %v835, %v836
    %v838 = vsub.f32 1.0, %v837
    %v839 = vmul.f32 %v836, %v838
    %v840 = vadd.f32 %v836, %v839
    %vm841 = vweird.f32 %v835
    %vm842 = vweird.f32 %v836
    %vm843 = vmor %vm841, %vm842
    %v844 = vsel %vm843, %v836, %v840
    %v845 = vand.u32 2147483647, %v835
    %vm846 = vcmp.eq.f32.partialorder %v845, 8.507059e+37
    %v847 = vand.u32 %v835, 2147483648
    %v848 = vor.u32 1.1754944e-38, %v847
    %v849 = vsel %vm846, %v848, %v844
    %v850 = vmul.f32 %v828, %v849
    %852 = vrot.lane.b32.xlu0 %v850, 64
    %v853 = vpop.permute.xlu0 %852
    %854 = vrot.lane.b32.xlu0 %v123, 40
    %v855 = vpop.permute.xlu0 %854
    %v857 = vsel %vm129, %v853, 0
    %859 = vmatpush.msra.mxu0 0.0
    %860 = vmatpush.msra.mxu0 0.0
    %861 = vmatpush.msra.mxu0 0.0
    %862 = vmatpush.msra.mxu0 0.0
    %863 = vmatpush.msra.mxu0 0.0
    %864 = vmatpush.msra.mxu0 0.0
    %865 = vmatpush.msra.mxu0 0.0
    %866 = vmatpush.msra.mxu0 0.0
    %867 = vmatpush.msra.mxu0 0.0
    %868 = vmatpush.msra.mxu0 0.0
    %869 = vmatpush.msra.mxu0 0.0
    %870 = vmatpush.msra.mxu0 0.0
    %871 = vmatpush.msra.mxu0 0.0
    %872 = vmatpush.msra.mxu0 0.0
    %873 = vmatpush.msra.mxu0 0.0
    %874 = vmatpush.msra.mxu0 %v855
    %875 = vmatmul.f32.gmra.mxu0 %v857
    %v876 = vpop.f32.mrf.mxu0
    %v877 = vadd.f32 0.0, %v876
    %878 = vdwg.mxu0
    %880 = vrot.lane.b32.xlu0 %v670, 72
    %v881 = vpop.permute.xlu0 %880
    %883 = vrot.lane.b32.xlu0 %v760, 80
    %v884 = vpop.permute.xlu0 %883
    %886 = vrot.lane.b32.xlu0 %v850, 88
    %v887 = vpop.permute.xlu0 %886
    %v889 = vsel %vm129, %v583, %v881
    %v890 = vsel %vm499, %v889, %v884
    %v891 = vsel %vm501, %v890, %v887
    %893 = vrot.lane.b32.xlu0 %v697, 8
    %v894 = vpop.permute.xlu0 %893
    %897 = vrot.lane.b32.xlu0 %v787, 16
    %v898 = vpop.permute.xlu0 %897
    %901 = vrot.lane.b32.xlu0 %v877, 24
    %v902 = vpop.permute.xlu0 %901
    %v904 = vsel %vm129, %v607, %v894
    %v905 = vsel %vm499, %v904, %v898
    %v906 = vsel %vm501, %v905, %v902
    %911 = vrot.lane.b32.xlu0 %v46, 32
    %v912 = vpop.permute.xlu0 %911
    %913 = vrot.lane.b32.xlu0 %v47, 32
    %v914 = vpop.permute.xlu0 %913
    %915 = vrot.lane.b32.xlu0 %v48, 32
    %v916 = vpop.permute.xlu0 %915
    %917 = vrot.lane.b32.xlu0 %v49, 32
    %v918 = vpop.permute.xlu0 %917
    %v924 = vsel %vm64, %v517, 0
    %v927 = vsel %vm64, %v906, 0
    %929 = vmatpush.msra.mxu0 0.0
    %930 = vmatpush.msra.mxu0 0.0
    %931 = vmatpush.msra.mxu0 0.0
    %932 = vmatpush.msra.mxu0 0.0
    %933 = vmatpush.msra.mxu0 0.0
    %934 = vmatpush.msra.mxu0 0.0
    %935 = vmatpush.msra.mxu0 0.0
    %936 = vmatpush.msra.mxu0 0.0
    %937 = vmatpush.msra.mxu0 0.0
    %938 = vmatpush.msra.mxu0 0.0
    %939 = vmatpush.msra.mxu0 0.0
    %940 = vmatpush.msra.mxu0 0.0
    %941 = vmatpush.msra.mxu0 %v918
    %942 = vmatpush.msra.mxu0 %v916
    %943 = vmatpush.msra.mxu0 %v914
    %944 = vmatpush.msra.mxu0 %v912
    %945 = vmatmul.f32.gmra.mxu0 %v924
    %v946 = vpop.f32.mrf.mxu0
    %v947 = vadd.f32 %v44, %v946
    %948 = vmatmul.f32.gmra.mxu0 %v927
    %v949 = vpop.f32.mrf.mxu0
    %v950 = vadd.f32 %v45, %v949
    %951 = vdwg.mxu0
    %v952 = vsel %vm64, %v947, 0.0
    %953 = vadd.xlane.f32.xlu0 %v952
    %v954 = vpop.xlane.xlu0 %953
    %v955 = vsel %vm64, %v950, 0.0
    %956 = vadd.xlane.f32.xlu0 %v955
    %v957 = vpop.xlane.xlu0 %956
    %v958 = vrcp.pop 32.0
    %v959 = vmul.f32 32.0, %v958
    %v960 = vsub.f32 1.0, %v959
    %v961 = vmul.f32 %v958, %v960
    %v962 = vadd.f32 %v958, %v961
    %vm963 = vweird.f32 %v958
    %v964 = vsel %vm963, %v958, %v962
    %v965 = vmul.f32 %v954, %v964
    %v966 = vmul.f32 %v957, %v964
    %v967 = vsub.f32 %v947, %v965
    %v968 = vsub.f32 %v950, %v966
    %v969 = vmul.f32 %v967, %v967
    %v970 = vmul.f32 %v968, %v968
    %v971 = vsel %vm64, %v969, 0.0
    %972 = vadd.xlane.f32.xlu0 %v971
    %v973 = vpop.xlane.xlu0 %972
    %v974 = vsel %vm64, %v970, 0.0
    %975 = vadd.xlane.f32.xlu0 %v974
    %v976 = vpop.xlane.xlu0 %975
    %v977 = vmul.f32 %v973, %v964
    %v978 = vmul.f32 %v976, %v964
    %v979 = vadd.f32 %v977, 1e-06
    %v980 = vadd.f32 %v978, 1e-06
    %v981 = vrsqrt.pop %v979
    %v982 = vmul.f32 %v981, %v979
    %v983 = vmul.f32 %v982, %v981
    %v984 = vmul.f32 0.5, %v983
    %v985 = vsub.f32 1.5, %v984
    %v986 = vmul.f32 %v981, %v985
    %vm987 = vweird.f32 %v979
    %vm988 = vweird.f32 %v981
    %vm989 = vmor %vm987, %vm988
    %v990 = vsel %vm989, %v981, %v986
    %v991 = vrsqrt.pop %v980
    %v992 = vmul.f32 %v991, %v980
    %v993 = vmul.f32 %v992, %v991
    %v994 = vmul.f32 0.5, %v993
    %v995 = vsub.f32 1.5, %v994
    %v996 = vmul.f32 %v991, %v995
    %vm997 = vweird.f32 %v980
    %vm998 = vweird.f32 %v991
    %vm999 = vmor %vm997, %vm998
    %v1000 = vsel %vm999, %v991, %v996
    %v1001 = vmul.f32 %v967, %v990
    %v1002 = vmul.f32 %v968, %v1000
    %v1003 = vperm.slane %v50, 0
    %v1004 = vmul.f32 %v1001, %v1003
    %v1005 = vmul.f32 %v1002, %v1003
    %v1006 = vperm.slane %v50, 1
    %v1007 = vadd.f32 %v1004, %v1006
    %v1008 = vadd.f32 %v1005, %v1006
    %v1009 = vsel %vm64, %v1007, 0.0
    %1010 = vadd.xlane.f32.xlu0 %v1009
    %v1011 = vpop.xlane.xlu0 %1010
    %v1012 = vsel %vm64, %v1008, 0.0
    %1013 = vadd.xlane.f32.xlu0 %v1012
    %v1014 = vpop.xlane.xlu0 %1013
    %v1015 = vmul.f32 %v1011, %v964
    %v1016 = vmul.f32 %v1014, %v964
    %v1017 = vsub.f32 %v1007, %v1015
    %v1018 = vsub.f32 %v1008, %v1016
    %v1019 = vmul.f32 %v1017, %v1017
    %v1020 = vmul.f32 %v1018, %v1018
    %v1021 = vsel %vm64, %v1019, 0.0
    %1022 = vadd.xlane.f32.xlu0 %v1021
    %v1023 = vpop.xlane.xlu0 %1022
    %v1024 = vsel %vm64, %v1020, 0.0
    %1025 = vadd.xlane.f32.xlu0 %v1024
    %v1026 = vpop.xlane.xlu0 %1025
    %v1027 = vmul.f32 %v1023, %v964
    %v1028 = vmul.f32 %v1026, %v964
    %v1029 = vadd.f32 %v1027, 1e-06
    %v1030 = vadd.f32 %v1028, 1e-06
    %v1031 = vrsqrt.pop %v1029
    %v1032 = vmul.f32 %v1031, %v1029
    %v1033 = vmul.f32 %v1032, %v1031
    %v1034 = vmul.f32 0.5, %v1033
    %v1035 = vsub.f32 1.5, %v1034
    %v1036 = vmul.f32 %v1031, %v1035
    %vm1037 = vweird.f32 %v1029
    %vm1038 = vweird.f32 %v1031
    %vm1039 = vmor %vm1037, %vm1038
    %v1040 = vsel %vm1039, %v1031, %v1036
    %v1041 = vrsqrt.pop %v1030
    %v1042 = vmul.f32 %v1041, %v1030
    %v1043 = vmul.f32 %v1042, %v1041
    %v1044 = vmul.f32 0.5, %v1043
    %v1045 = vsub.f32 1.5, %v1044
    %v1046 = vmul.f32 %v1041, %v1045
    %vm1047 = vweird.f32 %v1030
    %vm1048 = vweird.f32 %v1041
    %vm1049 = vmor %vm1047, %vm1048
    %v1050 = vsel %vm1049, %v1041, %v1046
    %v1051 = vmul.f32 %v1017, %v1040
    %v1052 = vmul.f32 %v1018, %v1050
    %v1053 = vperm.slane %v50, 2
    %v1054 = vmul.f32 %v1051, %v1053
    %v1055 = vmul.f32 %v1052, %v1053
    %v1056 = vperm.slane %v50, 3
    %v1057 = vadd.f32 %v1054, %v1056
    %v1058 = vadd.f32 %v1055, %v1056
    %v1059 = vperm.slane %v51, 0
    %v1061 = vsel %vm64, %v1057, 0
    %v1064 = vsel %vm64, %v1058, 0
    %1066 = vmatpush.msra.mxu0 0.0
    %1067 = vmatpush.msra.mxu0 0.0
    %1068 = vmatpush.msra.mxu0 0.0
    %1069 = vmatpush.msra.mxu0 0.0
    %1070 = vmatpush.msra.mxu0 0.0
    %1071 = vmatpush.msra.mxu0 0.0
    %1072 = vmatpush.msra.mxu0 0.0
    %1073 = vmatpush.msra.mxu0 0.0
    %1074 = vmatpush.msra.mxu0 0.0
    %1075 = vmatpush.msra.mxu0 0.0
    %1076 = vmatpush.msra.mxu0 0.0
    %1077 = vmatpush.msra.mxu0 0.0
    %1078 = vmatpush.msra.mxu0 %v55
    %1079 = vmatpush.msra.mxu0 %v54
    %1080 = vmatpush.msra.mxu0 %v53
    %1081 = vmatpush.msra.mxu0 %v52
    %1082 = vmatmul.f32.gmra.mxu0 %v1061
    %v1083 = vpop.f32.mrf.mxu0
    %v1084 = vadd.f32 %v1059, %v1083
    %1085 = vmatmul.f32.gmra.mxu0 %v1064
    %v1086 = vpop.f32.mrf.mxu0
    %v1087 = vadd.f32 %v1059, %v1086
    %1088 = vdwg.mxu0
    %v1089 = vmax.f32 %v1084, 0.0
    %v1090 = vmax.f32 %v1087, 0.0
    %v1091 = vperm.slane %v51, 1
    %vm1092 = vcmask 523264
    %v1094 = vsel %vm1092, %v1089, 0
    %v1097 = vsel %vm1092, %v1090, 0
    %1099 = vmatpush.msra.mxu0 0.0
    %1100 = vmatpush.msra.mxu0 0.0
    %1101 = vmatpush.msra.mxu0 0.0
    %1102 = vmatpush.msra.mxu0 0.0
    %1103 = vmatpush.msra.mxu0 0.0
    %1104 = vmatpush.msra.mxu0 0.0
    %1105 = vmatpush.msra.mxu0 0.0
    %1106 = vmatpush.msra.mxu0 0.0
    %1107 = vmatpush.msra.mxu0 %v63
    %1108 = vmatpush.msra.mxu0 %v62
    %1109 = vmatpush.msra.mxu0 %v61
    %1110 = vmatpush.msra.mxu0 %v60
    %1111 = vmatpush.msra.mxu0 %v59
    %1112 = vmatpush.msra.mxu0 %v58
    %1113 = vmatpush.msra.mxu0 %v57
    %1114 = vmatpush.msra.mxu0 %v56
    %1115 = vmatmul.f32.gmra.mxu0 %v1094
    %v1116 = vpop.f32.mrf.mxu0
    %v1117 = vadd.f32 %v1091, %v1116
    %1118 = vmatmul.f32.gmra.mxu0 %v1097
    %v1119 = vpop.f32.mrf.mxu0
    %v1120 = vadd.f32 %v1091, %v1119
    %1121 = vdwg.mxu0
    %v1122 = vadd.f32 %v1117, %v1057
    %v1123 = vadd.f32 %v1120, %v1058
    %v1124 = vsel %vm64, %v1122, 0.0
    %1125 = vadd.xlane.f32.xlu0 %v1124
    %v1126 = vpop.xlane.xlu0 %1125
    %v1127 = vsel %vm64, %v1123, 0.0
    %1128 = vadd.xlane.f32.xlu0 %v1127
    %v1129 = vpop.xlane.xlu0 %1128
    %v1130 = vmul.f32 %v1126, %v964
    %v1131 = vmul.f32 %v1129, %v964
    %v1132 = vsub.f32 %v1122, %v1130
    %v1133 = vsub.f32 %v1123, %v1131
    %v1134 = vmul.f32 %v1132, %v1132
    %v1135 = vmul.f32 %v1133, %v1133
    %v1136 = vsel %vm64, %v1134, 0.0
    %1137 = vadd.xlane.f32.xlu0 %v1136
    %v1138 = vpop.xlane.xlu0 %1137
    %v1139 = vsel %vm64, %v1135, 0.0
    %1140 = vadd.xlane.f32.xlu0 %v1139
    %v1141 = vpop.xlane.xlu0 %1140
    %v1142 = vmul.f32 %v1138, %v964
    %v1143 = vmul.f32 %v1141, %v964
    %v1144 = vadd.f32 %v1142, 1e-06
    %v1145 = vadd.f32 %v1143, 1e-06
    %v1146 = vrsqrt.pop %v1144
    %v1147 = vmul.f32 %v1146, %v1144
    %v1148 = vmul.f32 %v1147, %v1146
    %v1149 = vmul.f32 0.5, %v1148
    %v1150 = vsub.f32 1.5, %v1149
    %v1151 = vmul.f32 %v1146, %v1150
    %vm1152 = vweird.f32 %v1144
    %vm1153 = vweird.f32 %v1146
    %vm1154 = vmor %vm1152, %vm1153
    %v1155 = vsel %vm1154, %v1146, %v1151
    %v1156 = vrsqrt.pop %v1145
    %v1157 = vmul.f32 %v1156, %v1145
    %v1158 = vmul.f32 %v1157, %v1156
    %v1159 = vmul.f32 0.5, %v1158
    %v1160 = vsub.f32 1.5, %v1159
    %v1161 = vmul.f32 %v1156, %v1160
    %vm1162 = vweird.f32 %v1145
    %vm1163 = vweird.f32 %v1156
    %vm1164 = vmor %vm1162, %vm1163
    %v1165 = vsel %vm1164, %v1156, %v1161
    %v1166 = vmul.f32 %v1132, %v1155
    %v1167 = vmul.f32 %v1133, %v1165
    %v1168 = vperm.slane %v50, 4
    %v1169 = vmul.f32 %v1166, %v1168
    %v1170 = vmul.f32 %v1167, %v1168
    %v1171 = vperm.slane %v50, 5
    %v1172 = vadd.f32 %v1169, %v1171
    %v1173 = vadd.f32 %v1170, %v1171
    %v1174 = vsel %vm64, %v1172, 0.0
    %1175 = vadd.xlane.f32.xlu0 %v1174
    %v1176 = vpop.xlane.xlu0 %1175
    %v1177 = vsel %vm64, %v1173, 0.0
    %1178 = vadd.xlane.f32.xlu0 %v1177
    %v1179 = vpop.xlane.xlu0 %1178
    %v1180 = vmul.f32 %v1176, %v964
    %v1181 = vmul.f32 %v1179, %v964
    %v1182 = vsub.f32 %v1172, %v1180
    %v1183 = vsub.f32 %v1173, %v1181
    %v1184 = vmul.f32 %v1182, %v1182
    %v1185 = vmul.f32 %v1183, %v1183
    %v1186 = vsel %vm64, %v1184, 0.0
    %1187 = vadd.xlane.f32.xlu0 %v1186
    %v1188 = vpop.xlane.xlu0 %1187
    %v1189 = vsel %vm64, %v1185, 0.0
    %1190 = vadd.xlane.f32.xlu0 %v1189
    %v1191 = vpop.xlane.xlu0 %1190
    %v1192 = vmul.f32 %v1188, %v964
    %v1193 = vmul.f32 %v1191, %v964
    %v1194 = vadd.f32 %v1192, 1e-06
    %v1195 = vadd.f32 %v1193, 1e-06
    %v1196 = vrsqrt.pop %v1194
    %v1197 = vmul.f32 %v1196, %v1194
    %v1198 = vmul.f32 %v1197, %v1196
    %v1199 = vmul.f32 0.5, %v1198
    %v1200 = vsub.f32 1.5, %v1199
    %v1201 = vmul.f32 %v1196, %v1200
    %vm1202 = vweird.f32 %v1194
    %vm1203 = vweird.f32 %v1196
    %vm1204 = vmor %vm1202, %vm1203
    %v1205 = vsel %vm1204, %v1196, %v1201
    %v1206 = vrsqrt.pop %v1195
    %v1207 = vmul.f32 %v1206, %v1195
    %v1208 = vmul.f32 %v1207, %v1206
    %v1209 = vmul.f32 0.5, %v1208
    %v1210 = vsub.f32 1.5, %v1209
    %v1211 = vmul.f32 %v1206, %v1210
    %vm1212 = vweird.f32 %v1195
    %vm1213 = vweird.f32 %v1206
    %vm1214 = vmor %vm1212, %vm1213
    %v1215 = vsel %vm1214, %v1206, %v1211
    %v1216 = vmul.f32 %v1182, %v1205
    %v1217 = vmul.f32 %v1183, %v1215
    %v1218 = vperm.slane %v50, 6
    %v1219 = vmul.f32 %v1216, %v1218
    %v1220 = vmul.f32 %v1217, %v1218
    %v1221 = vperm.slane %v50, 7
    %v1222 = vadd.f32 %v1219, %v1221
    %v1223 = vadd.f32 %v1220, %v1221
    %1226 = vrot.lane.b32.xlu0 %v502, 32
    %v1227 = vpop.permute.xlu0 %1226
    %1228 = vrot.lane.b32.xlu0 %v891, 32
    %v1229 = vpop.permute.xlu0 %1228
    %v1232 = vsel %vm64, %v1222, %v1227
    %v1233 = vsel %vm64, %v1223, %v1229
    %v1234 = vsel %vm1092, %v1232, 0.0
    %v1235 = vsel %vm1092, %v1233, 0.0
    %1236 = vst [vmem:[#allocation7] sm:$0xff] %v1234
    %1237 = vst [vmem:[#allocation7 + $0x8] sm:$0xff] %v1235
    // Predicated region
    $region18: #{tpu_custom_call.1} parent=1 // pred_check
      _
    $region19: #{tpu_custom_call.1} parent=1 // pred_check_branch
      %1239 = sbr.rel (0) target = $region21
    $region20: #{tpu_custom_call.1} parent=1 // pred_region
      %1241 = vsyncadd [#allocation4], 0
      %s1242 = sshll.u32 [#allocation7], 4
      %s1243 = int_to_ptr.vmem [resolvable:$true] %s1242
      %s1244 = sshll.u32 %s2, 4
      %s1245 = int_to_ptr.hbm [resolvable:$true] %s1244
      %1250 = dma.vmem_to_hbm [thread:$0]  %s1243, 256, %s1245, [#allocation4], 128, 128, 8
    $region21: #{tpu_custom_call.1} parent=1 // pred_fallthru
      _
    // Predicated region
    $region22: #{tpu_custom_call.1} parent=1 // pred_check
      _
    $region23: #{tpu_custom_call.1} parent=1 // pred_check_branch
      %1252 = sbr.rel (0) target = $region25
    $region24: #{tpu_custom_call.1} parent=1 // pred_region
      %1254 = dma.done [#allocation4], 256
    $region25: #{tpu_custom_call.1} parent=1 // pred_fallthru
      _
    %1255 = vsyncpa [#allocation3], 1
    %1256 = vsyncpa [#allocation6], 1
    %1257 = vsyncpa [#allocation4], 1

</llo_original>
